<compile_context>
chip_gen: v6e
topology: v6e:2x2x1
jax: 0.10.0
libtpu: 0.0.40
codegen_flags: <defaults>
</compile_context>

<pallas_src>
import jax
import jax.numpy as jnp
from jax.experimental import pallas as pl
from jax.experimental.pallas import tpu as pltpu


def linear_kernel(x_ref, w_ref, b_ref, o_ref):
    """One (M, tn) output slab: Y_j = X @ W_j^T + b_j in a single MXU pass.

    x_ref: (M, K) activations (grid-invariant, resident in VMEM)
    w_ref: (tn, K) slab of the PyTorch (out, in) weight
    b_ref: (1, tn) bias chunk
    """
    y = jax.lax.dot_general(
        x_ref[...], w_ref[...],
        dimension_numbers=(((1,), (1,)), ((), ())),  # contract K with K == X @ W^T
        preferred_element_type=jnp.float32,
    )
    o_ref[...] = (y + b_ref[...]).astype(o_ref.dtype)


def linear_pallas(x2d, weight_nk, bias, *, tn=128):
    """Y = X @ W^T + b with W in PyTorch (out_features, in_features) layout."""
    M, K = x2d.shape
    N, K_w = weight_nk.shape
    assert K == K_w, "in_features mismatch"
    if N % tn != 0:
        tn = N  # fallback: single N step (still correct, just un-pipelined)
    bias2d = bias.reshape(1, N)

    itemsize = jnp.dtype(x2d.dtype).itemsize
    cost = pl.CostEstimate(
        flops=2 * M * N * K,
        transcendentals=0,
        bytes_accessed=itemsize * (M * K + N * K + M * N + N),
    )

    return pl.pallas_call(
        linear_kernel,
        out_shape=jax.ShapeDtypeStruct((M, N), x2d.dtype),
        grid=(N // tn,),
        in_specs=[
            pl.BlockSpec((M, K), lambda j: (0, 0)),    # X: full, grid-invariant (fetched once)
            pl.BlockSpec((tn, K), lambda j: (j, 0)),   # W: streamed along N in (tn, K) slabs
            pl.BlockSpec((1, tn), lambda j: (0, j)),   # bias chunk
        ],
        out_specs=pl.BlockSpec((M, tn), lambda j: (0, j)),
        compiler_params=pltpu.CompilerParams(
            dimension_semantics=("parallel",),         # independent N slabs; 3+3 TC split on v7x
        ),
        cost_estimate=cost,
    )(x2d, weight_nk, bias2d)


def module_m_forward(x, weight, bias):
    """Equivalent of M.forward: x103 -> Linear(768, 768)(x103)."""
    B, S, K = x.shape
    N = weight.shape[0]
    x2d = x.reshape(B * S, K)
    # Weight stays in its PyTorch (out, in) layout -- no transpose in HBM.
    y2d = linear_pallas(x2d, weight, bias)
    return y2d.reshape(B, S, N)


if __name__ == "__main__":
    key = jax.random.PRNGKey(0)
    kx, kw, kb = jax.random.split(key, 3)

    # Shapes implied by the module: x103 is (1, 384, 768), Linear(768 -> 768).
    x103 = jax.random.normal(kx, (1, 384, 768), dtype=jnp.float32)
    # Deterministic synthetic parameters (PyTorch Linear stores weight as (out, in)).
    weight = jax.random.normal(kw, (768, 768), dtype=jnp.float32) * 0.02
    bias = jax.random.normal(kb, (768,), dtype=jnp.float32) * 0.02

    y = module_m_forward(x103, weight, bias)
    y = jax.block_until_ready(y)

    # Reference check against plain JAX (same math as torch.nn.Linear).
    y_ref = x103 @ weight.T + bias
    assert y.shape == (1, 384, 768)
    assert jnp.allclose(y, y_ref, atol=1e-4, rtol=1e-4)

    print("KERNEL_OK")
</pallas_src>

<mosaic_0001>
module attributes {stable_mosaic.version = 11 : i64} {
  func.func @linear_kernel(%arg0: i32, %arg1: memref<384x768xf32, #tpu.memory_space<vmem>>, %arg2: memref<128x768xf32, #tpu.memory_space<vmem>>, %arg3: memref<1x128xf32, #tpu.memory_space<vmem>>, %arg4: memref<384x128xf32, #tpu.memory_space<vmem>>) attributes {dimension_semantics = [#tpu.dimension_semantics<parallel>], iteration_bounds = array<i64: 6>, scalar_prefetch = 0 : i64, scratch_operands = 0 : i64, tpu.core_type = #tpu.core_type<tc>, window_params = [{pipeline_mode = #tpu.pipeline_mode<synchronous>, transform_indices = @transform_0, window_bounds = array<i64: 384, 768>}, {transform_indices = @transform_1, window_bounds = array<i64: 128, 768>}, {transform_indices = @transform_2, window_bounds = array<i64: 1, 128>}, {transform_indices = @transform_3, window_bounds = array<i64: 384, 128>}]} {
    %c0 = arith.constant 0 : index
    %c0_0 = arith.constant 0 : index
    %0 = vector.load %arg1[%c0, %c0_0] : memref<384x768xf32, #tpu.memory_space<vmem>>, vector<384x768xf32>
    %c0_1 = arith.constant 0 : index
    %c0_2 = arith.constant 0 : index
    %1 = vector.load %arg2[%c0_1, %c0_2] : memref<128x768xf32, #tpu.memory_space<vmem>>, vector<128x768xf32>
    %cst = arith.constant dense<0.000000e+00> : vector<384x128xf32>
    %2 = tpu.matmul %0, %1, %cst {dimension_numbers = #tpu.dot_dimension_numbers<[1], [1], [0], [0], [0, 0, 1, 0], [], []>} : vector<384x768xf32>, vector<128x768xf32>, vector<384x128xf32> -> vector<384x128xf32>
    %c0_3 = arith.constant 0 : index
    %c0_4 = arith.constant 0 : index
    %3 = vector.load %arg3[%c0_3, %c0_4] : memref<1x128xf32, #tpu.memory_space<vmem>>, vector<1x128xf32>
    %4 = vector.broadcast %3 : vector<1x128xf32> to vector<384x128xf32>
    %5 = arith.addf %2, %4 : vector<384x128xf32>
    %c0_5 = arith.constant 0 : index
    %c0_6 = arith.constant 0 : index
    %6 = vector.load %arg4[%c0_5, %c0_6] : memref<384x128xf32, #tpu.memory_space<vmem>>, vector<384x128xf32>
    tpu.vector_store %arg4[%c0_5, %c0_6], %5 {strides = array<i32>} : memref<384x128xf32, #tpu.memory_space<vmem>>, vector<384x128xf32>,
    return
  }
  func.func @transform_0(%arg0: i32) -> (i32, i32) {
    %c0_i32 = arith.constant 0 : i32
    %c0_i32_0 = arith.constant 0 : i32
    %c0_i32_1 = arith.constant 0 : i32
    return %c0_i32, %c0_i32_0 : i32, i32
  }
  func.func @transform_1(%arg0: i32) -> (i32, i32) {
    %c0_i32 = arith.constant 0 : i32
    %c0_i32_0 = arith.constant 0 : i32
    return %arg0, %c0_i32 : i32, i32
  }
  func.func @transform_2(%arg0: i32) -> (i32, i32) {
    %c0_i32 = arith.constant 0 : i32
    %c0_i32_0 = arith.constant 0 : i32
    return %c0_i32, %arg0 : i32, i32
  }
  func.func @transform_3(%arg0: i32) -> (i32, i32) {
    %c0_i32 = arith.constant 0 : i32
    %c0_i32_0 = arith.constant 0 : i32
    return %c0_i32, %arg0 : i32, i32
  }
}

</mosaic_0001>

<llo_original>
// kernel: tpu_custom_call.1
$region0: #{tpu_custom_call.1}
  #allocation0 [shape = 'u32[]', space=smem, size = 0x4, offset = 0x4, fixed_abs, tag = 'smem constant byte address 0x4 - core index']
  #allocation1 [shape = 'u32[144,128]{1,0:T(1,128)}', space=vmem, size = 0x12000, scoped, tag = 'internal scratch']
  %s0 = inlined_call_operand.hbm [shape: f32[384,768], index: 0, kind: input, shape index: {}]
  %s1 = inlined_call_operand.hbm [shape: f32[768,768], index: 1, kind: input, shape index: {}]
  %s2 = inlined_call_operand.hbm [shape: f32[1,768], index: 2, kind: input, shape index: {}]
  %s3 = inlined_call_operand.hbm [shape: f32[384,768], index: 3, kind: output, shape index: {}]
  %s4 = sld [smem:[#allocation0]]
  $region57: #{tpu_custom_call.1} parent=0
    _
  %s6 = ssub.s32 1, %s4
  %s7 = scalar_select 0, %s6, %s4
  $region1: #{tpu_custom_call.1} parent=0
    #allocation2 [shape = 'u8[1179648]{0}', space=vmem, size = 0x120000, scoped, tag = 'input window, operand 0, single buffered']
    #allocation3 [shape = 's32[2]{0}', space=sflag, size = 0x8, scoped, tag = 'scoped memory for tpu_custom_call.1']
    #allocation4 [shape = 's32[2]{0}', space=sflag, size = 0x8, scoped, tag = 'scoped memory for tpu_custom_call.1']
    #allocation5 [shape = 'u8[786432]{0}', space=vmem, size = 0xc0000, scoped, tag = 'input window, operand 1']
    #allocation6 [shape = 's32[2]{0}', space=sflag, size = 0x8, scoped, tag = 'scoped memory for tpu_custom_call.1']
    #allocation7 [shape = 'u8[1024]{0}', space=vmem, size = 0x400, scoped, tag = 'input window, operand 2']
    #allocation8 [shape = 'u8[393216]{0}', space=vmem, size = 0x60000, scoped, tag = 'output window, operand 0']
    %8 = vsyncpa [#allocation3], 0
    %9 = vsyncpa [#allocation6], 0
    %s10 = scalar_lea.sflag [#allocation6], 1
    %11 = vsyncpa %s10, 0
    %12 = vsyncpa [#allocation4], 0
    %s13 = scalar_lea.sflag [#allocation4], 1
    %14 = vsyncpa %s13, 0
    loop: start=0, step=1, limit=8
    $region2: #{tpu_custom_call.1} parent=1 // loop_pre_header
      _
    $region3: #{tpu_custom_call.1} parent=1 // loop_header
      %s16 = sphi 0, %s20
      %p17 = scmp.ge.s32.totalorder %s16, 8
      %s24 = sphi 0, %s24
      %s26 = sphi 0, %s24
      %s27 = sphi 0, %s26
      %s41 = sphi 0, %s27
      %s47 = sphi 0, %s49
      %s50 = sphi 0, %s47
      %s51 = sphi 0, %s50
      %s67 = sphi 0, %s51
      %s73 = sphi 0, %s75
      %s76 = sphi 0, %s73
      %s77 = sphi 0, %s76
      %s93 = sphi 0, %s77
      %s99 = sphi 0, %s101
      %s102 = sphi 0, %s99
      %s103 = sphi 0, %s102
      %s119 = sphi 0, %s103
    $region4: #{tpu_custom_call.1} parent=1 // loop_header_branch
      %19 = sbr.rel (%p17) target = $region8
    $region5: #{tpu_custom_call.1} parent=1 // loop_body
      %s21 = ssub.s32 %s16, 1
      %s22 = ssub.s32 %s16, 2
      %s23 = sadd.s32 %s16, 1
      %s25 = sadd.s32 %s24, 1
      %p28 = scmp.eq.s32.totalorder %s16, 5
      %p29 = scmp.ne.s32.totalorder %s24, %s26
      %p30 = scmp.eq.s32.totalorder %s16, 0
      %p31 = por %p29, %p30
      %p32 = scmp.ne.s32.totalorder %s24, %s26
      %p33 = scmp.eq.s32.totalorder %s21, 5
      %p34 = por %p32, %p33
      %p35 = scmp.ne.s32.totalorder %s26, %s27
      %p36 = scmp.eq.s32.totalorder %s21, 0
      %p37 = por %p35, %p36
      %p38 = scmp.ne.s32.totalorder %s26, %s27
      %p39 = scmp.eq.s32.totalorder %s22, 5
      %p40 = por %p38, %p39
      %p42 = scmp.ne.s32.totalorder %s27, %s41
      %p43 = scmp.eq.s32.totalorder %s22, 0
      %p44 = por %p42, %p43
      %s45 = ssub.s32 %s16, %s23
      %p46 = scmp.eq.s32.totalorder %s45, 0
      %s48 = sadd.s32 %s47, 1
      %s49 = scalar_select %p46, %s47, %s48
      %p52 = pneg %p46
      %p53 = scmp.eq.s32.totalorder %s16, 5
      %p54 = por %p52, %p53
      %p55 = scmp.ne.s32.totalorder %s47, %s50
      %p56 = scmp.eq.s32.totalorder %s16, 0
      %p57 = por %p55, %p56
      %p58 = scmp.ne.s32.totalorder %s47, %s50
      %p59 = scmp.eq.s32.totalorder %s21, 5
      %p60 = por %p58, %p59
      %p61 = scmp.ne.s32.totalorder %s50, %s51
      %p62 = scmp.eq.s32.totalorder %s21, 0
      %p63 = por %p61, %p62
      %p64 = scmp.ne.s32.totalorder %s50, %s51
      %p65 = scmp.eq.s32.totalorder %s22, 5
      %p66 = por %p64, %p65
      %p68 = scmp.ne.s32.totalorder %s51, %s67
      %p69 = scmp.eq.s32.totalorder %s22, 0
      %p70 = por %p68, %p69
      %s71 = ssub.s32 %s16, %s23
      %p72 = scmp.eq.s32.totalorder %s71, 0
      %s74 = sadd.s32 %s73, 1
      %s75 = scalar_select %p72, %s73, %s74
      %p78 = pneg %p72
      %p79 = scmp.eq.s32.totalorder %s16, 5
      %p80 = por %p78, %p79
      %p81 = scmp.ne.s32.totalorder %s73, %s76
      %p82 = scmp.eq.s32.totalorder %s16, 0
      %p83 = por %p81, %p82
      %p84 = scmp.ne.s32.totalorder %s73, %s76
      %p85 = scmp.eq.s32.totalorder %s21, 5
      %p86 = por %p84, %p85
      %p87 = scmp.ne.s32.totalorder %s76, %s77
      %p88 = scmp.eq.s32.totalorder %s21, 0
      %p89 = por %p87, %p88
      %p90 = scmp.ne.s32.totalorder %s76, %s77
      %p91 = scmp.eq.s32.totalorder %s22, 5
      %p92 = por %p90, %p91
      %p94 = scmp.ne.s32.totalorder %s77, %s93
      %p95 = scmp.eq.s32.totalorder %s22, 0
      %p96 = por %p94, %p95
      %s97 = ssub.s32 %s16, %s23
      %p98 = scmp.eq.s32.totalorder %s97, 0
      %s100 = sadd.s32 %s99, 1
      %s101 = scalar_select %p98, %s99, %s100
      %p104 = pneg %p98
      %p105 = scmp.eq.s32.totalorder %s16, 5
      %p106 = por %p104, %p105
      %p107 = scmp.ne.s32.totalorder %s99, %s102
      %p108 = scmp.eq.s32.totalorder %s16, 0
      %p109 = por %p107, %p108
      %p110 = scmp.ne.s32.totalorder %s99, %s102
      %p111 = scmp.eq.s32.totalorder %s21, 5
      %p112 = por %p110, %p111
      %p113 = scmp.ne.s32.totalorder %s102, %s103
      %p114 = scmp.eq.s32.totalorder %s21, 0
      %p115 = por %p113, %p114
      %p116 = scmp.ne.s32.totalorder %s102, %s103
      %p117 = scmp.eq.s32.totalorder %s22, 5
      %p118 = por %p116, %p117
      %p120 = scmp.ne.s32.totalorder %s103, %s119
      %p121 = scmp.eq.s32.totalorder %s22, 0
      %p122 = por %p120, %p121
      %p123 = scmp.le.s32.totalorder 1, %s16
      %p124 = scmp.lt.s32.totalorder %s16, 7
      %p125 = pnand %p123, %p124
      %p126 = pneg %p125
      // Predicated region
      $region9: #{tpu_custom_call.1} parent=5 // pred_check
        _
      $region10: #{tpu_custom_call.1} parent=5 // pred_check_branch
        %128 = sbr.rel (%p125) target = $region12
      $region11: #{tpu_custom_call.1} parent=5 // pred_region
        %s129 = ssub.s32 %s16, 1
        // Predicated region
        $region13: #{tpu_custom_call.1} parent=11 // pred_check
          %p130 = pneg %p37
        $region14: #{tpu_custom_call.1} parent=11 // pred_check_branch
          %132 = sbr.rel (%p130) target = $region16
        $region15: #{tpu_custom_call.1} parent=11 // pred_region
          %s134 = ssub.s32 36864, 36864
          %135 = vsyncadd [#allocation3], %s134
          %s136 = sshll.u32 [#allocation2], 4
          %s137 = int_to_ptr.vmem [resolvable:$true] %s136
          %142 = dma.hbm_to_vmem [thread:$0]  %s0, 36864, %s137, [#allocation3], 768, 768, 48
        $region16: #{tpu_custom_call.1} parent=11 // pred_fallthru
          _
      $region12: #{tpu_custom_call.1} parent=5 // pred_fallthru
        _
      %p143 = scmp.lt.s32.totalorder %s16, 6
      // Predicated region
      $region17: #{tpu_custom_call.1} parent=5 // pred_check
        %p144 = pneg %p143
      $region18: #{tpu_custom_call.1} parent=5 // pred_check_branch
        %146 = sbr.rel (%p144) target = $region20
      $region19: #{tpu_custom_call.1} parent=5 // pred_region
        // Predicated region
        $region21: #{tpu_custom_call.1} parent=19 // pred_check
          %p147 = pneg %p57
        $region22: #{tpu_custom_call.1} parent=19 // pred_check_branch
          %149 = sbr.rel (%p147) target = $region24
        $region23: #{tpu_custom_call.1} parent=19 // pred_region
          %s150 = sand.u32 %s16, 1
          %s151 = scalar_lea.sflag [#allocation6], %s150
          %s152 = sand.u32 %s47, 1
          %s153 = smul.addr %s152, 768
          %s154 = scalar_lea.vmem [#allocation5], %s153
          %s155 = smul.u32 16, %s16
          %s157 = ssub.s32 12288, 12288
          %158 = vsyncadd %s151, %s157
          %s159 = smul.addr %s155, 6
          %s160 = smul.addr %s159, 128
          %s161 = scalar_lea.hbm %s1, %s160
          %s162 = sshll.u32 %s154, 4
          %s163 = int_to_ptr.vmem [resolvable:$true] %s162
          %168 = dma.hbm_to_vmem [thread:$0]  %s161, 12288, %s163, %s151, 768, 768, 48
        $region24: #{tpu_custom_call.1} parent=19 // pred_fallthru
          _
        // Predicated region
        $region25: #{tpu_custom_call.1} parent=19 // pred_check
          %p169 = pneg %p83
        $region26: #{tpu_custom_call.1} parent=19 // pred_check_branch
          %171 = sbr.rel (%p169) target = $region28
        $region27: #{tpu_custom_call.1} parent=19 // pred_region
          %s172 = sand.u32 %s16, 1
          %s173 = scalar_lea.sflag [#allocation6], %s172
          %s174 = sand.u32 %s73, 1
          %s175 = scalar_lea.vmem [#allocation7], %s174
          %s177 = ssub.s32 16, 16
          %178 = vsyncadd %s173, %s177
          %s179 = smul.addr %s16, 16
          %s180 = scalar_lea.hbm %s2, %s179
          %s182 = sshll.u32 %s175, 4
          %s183 = int_to_ptr.vmem [resolvable:$true] %s182
          %185 = dma.hbm_to_vmem [thread:$0]  %s180, 16, %s183, %s173
        $region28: #{tpu_custom_call.1} parent=19 // pred_fallthru
          _
      $region20: #{tpu_custom_call.1} parent=5 // pred_fallthru
        _
      %p186 = scmp.le.s32.totalorder 1, %s16
      %p187 = scmp.lt.s32.totalorder %s16, 7
      %p188 = pnand %p186, %p187
      %p189 = pneg %p188
      // Predicated region
      $region29: #{tpu_custom_call.1} parent=5 // pred_check
        _
      $region30: #{tpu_custom_call.1} parent=5 // pred_check_branch
        %191 = sbr.rel (%p188) target = $region32
      $region31: #{tpu_custom_call.1} parent=5 // pred_region
        %s192 = ssub.s32 %s16, 1
        // Predicated region
        $region33: #{tpu_custom_call.1} parent=31 // pred_check
          %p193 = pneg %p37
        $region34: #{tpu_custom_call.1} parent=31 // pred_check_branch
          %195 = sbr.rel (%p193) target = $region36
        $region35: #{tpu_custom_call.1} parent=31 // pred_region
          %196 = dma.done [#allocation3], 36864
        $region36: #{tpu_custom_call.1} parent=31 // pred_fallthru
          _
        %s197 = sand.u32 %s21, 1
        %s198 = scalar_lea.sflag [#allocation6], %s197
        %s199 = sand.u32 %s50, 1
        %s200 = smul.addr %s199, 768
        %s201 = scalar_lea.vmem [#allocation5], %s200
        // Predicated region
        $region37: #{tpu_custom_call.1} parent=31 // pred_check
          %p202 = pneg %p63
        $region38: #{tpu_custom_call.1} parent=31 // pred_check_branch
          %204 = sbr.rel (%p202) target = $region40
        $region39: #{tpu_custom_call.1} parent=31 // pred_region
          %205 = dma.done %s198, 12288
        $region40: #{tpu_custom_call.1} parent=31 // pred_fallthru
          _
        %s206 = sand.u32 %s21, 1
        %s207 = scalar_lea.sflag [#allocation6], %s206
        %s208 = sand.u32 %s76, 1
        %s209 = scalar_lea.vmem [#allocation7], %s208
        // Predicated region
        $region41: #{tpu_custom_call.1} parent=31 // pred_check
          %p210 = pneg %p89
        $region42: #{tpu_custom_call.1} parent=31 // pred_check_branch
          %212 = sbr.rel (%p210) target = $region44
        $region43: #{tpu_custom_call.1} parent=31 // pred_region
          %213 = dma.done %s207, 16
        $region44: #{tpu_custom_call.1} parent=31 // pred_fallthru
          _
        %p214 = pneg %p37
        %p215 = pneg %p34
        %s216 = sand.u32 %s21, 1
        %s217 = scalar_lea.sflag [#allocation6], %s216
        %s218 = sand.u32 %s50, 1
        %s219 = smul.addr %s218, 768
        %s220 = scalar_lea.vmem [#allocation5], %s219
        %p221 = pneg %p63
        %p222 = pneg %p60
        %s223 = sand.u32 %s21, 1
        %s224 = scalar_lea.sflag [#allocation6], %s223
        %s225 = sand.u32 %s76, 1
        %s226 = scalar_lea.vmem [#allocation7], %s225
        %p227 = pneg %p89
        %p228 = pneg %p86
        %p229 = pneg %p115
        %p230 = pneg %p112
        %s231 = sand.u32 %s102, 1
        %s232 = scalar_lea.sflag [#allocation4], %s231
        %s233 = sand.u32 %s102, 1
        %s234 = smul.addr %s233, 384
        %s235 = scalar_lea.vmem [#allocation8], %s234
        %s236 = smul.u32 16, %s21
        %v237 = vld [vmem:[#allocation2] sm:$0xff]
        %v238 = vld [vmem:[#allocation2 + $0x8] sm:$0xff]
        %v239 = vld [vmem:[#allocation2 + $0x10] sm:$0xff]
        %v240 = vld [vmem:[#allocation2 + $0x18] sm:$0xff]
        %v241 = vld [vmem:[#allocation2 + $0x20] sm:$0xff]
        %v242 = vld [vmem:[#allocation2 + $0x28] sm:$0xff]
        %v243 = vld [vmem:[#allocation2 + $0x30] sm:$0xff]
        %v244 = vld [vmem:[#allocation2 + $0x38] sm:$0xff]
        %v245 = vld [vmem:[#allocation2 + $0x40] sm:$0xff]
        %v246 = vld [vmem:[#allocation2 + $0x48] sm:$0xff]
        %v247 = vld [vmem:[#allocation2 + $0x50] sm:$0xff]
        %v248 = vld [vmem:[#allocation2 + $0x58] sm:$0xff]
        %v249 = vld [vmem:[#allocation2 + $0x60] sm:$0xff]
        %v250 = vld [vmem:[#allocation2 + $0x68] sm:$0xff]
        %v251 = vld [vmem:[#allocation2 + $0x70] sm:$0xff]
        %v252 = vld [vmem:[#allocation2 + $0x78] sm:$0xff]
        %v253 = vld [vmem:[#allocation2 + $0x80] sm:$0xff]
        %v254 = vld [vmem:[#allocation2 + $0x88] sm:$0xff]
        %v255 = vld [vmem:[#allocation2 + $0x90] sm:$0xff]
        %v256 = vld [vmem:[#allocation2 + $0x98] sm:$0xff]
        %v257 = vld [vmem:[#allocation2 + $0xa0] sm:$0xff]
        %v258 = vld [vmem:[#allocation2 + $0xa8] sm:$0xff]
        %v259 = vld [vmem:[#allocation2 + $0xb0] sm:$0xff]
        %v260 = vld [vmem:[#allocation2 + $0xb8] sm:$0xff]
        %v261 = vld [vmem:[#allocation2 + $0xc0] sm:$0xff]
        %v262 = vld [vmem:[#allocation2 + $0xc8] sm:$0xff]
        %v263 = vld [vmem:[#allocation2 + $0xd0] sm:$0xff]
        %v264 = vld [vmem:[#allocation2 + $0xd8] sm:$0xff]
        %v265 = vld [vmem:[#allocation2 + $0xe0] sm:$0xff]
        %v266 = vld [vmem:[#allocation2 + $0xe8] sm:$0xff]
        %v267 = vld [vmem:[#allocation2 + $0xf0] sm:$0xff]
        %v268 = vld [vmem:[#allocation2 + $0xf8] sm:$0xff]
        %v269 = vld [vmem:[#allocation2 + $0x100] sm:$0xff]
        %v270 = vld [vmem:[#allocation2 + $0x108] sm:$0xff]
        %v271 = vld [vmem:[#allocation2 + $0x110] sm:$0xff]
        %v272 = vld [vmem:[#allocation2 + $0x118] sm:$0xff]
        %v273 = vld [vmem:[#allocation2 + $0x120] sm:$0xff]
        %v274 = vld [vmem:[#allocation2 + $0x128] sm:$0xff]
        %v275 = vld [vmem:[#allocation2 + $0x130] sm:$0xff]
        %v276 = vld [vmem:[#allocation2 + $0x138] sm:$0xff]
        %v277 = vld [vmem:[#allocation2 + $0x140] sm:$0xff]
        %v278 = vld [vmem:[#allocation2 + $0x148] sm:$0xff]
        %v279 = vld [vmem:[#allocation2 + $0x150] sm:$0xff]
        %v280 = vld [vmem:[#allocation2 + $0x158] sm:$0xff]
        %v281 = vld [vmem:[#allocation2 + $0x160] sm:$0xff]
        %v282 = vld [vmem:[#allocation2 + $0x168] sm:$0xff]
        %v283 = vld [vmem:[#allocation2 + $0x170] sm:$0xff]
        %v284 = vld [vmem:[#allocation2 + $0x178] sm:$0xff]
        %v285 = vld [vmem:[#allocation2 + $0x180] sm:$0xff]
        %v286 = vld [vmem:[#allocation2 + $0x188] sm:$0xff]
        %v287 = vld [vmem:[#allocation2 + $0x190] sm:$0xff]
        %v288 = vld [vmem:[#allocation2 + $0x198] sm:$0xff]
        %v289 = vld [vmem:[#allocation2 + $0x1a0] sm:$0xff]
        %v290 = vld [vmem:[#allocation2 + $0x1a8] sm:$0xff]
        %v291 = vld [vmem:[#allocation2 + $0x1b0] sm:$0xff]
        %v292 = vld [vmem:[#allocation2 + $0x1b8] sm:$0xff]
        %v293 = vld [vmem:[#allocation2 + $0x1c0] sm:$0xff]
        %v294 = vld [vmem:[#allocation2 + $0x1c8] sm:$0xff]
        %v295 = vld [vmem:[#allocation2 + $0x1d0] sm:$0xff]
        %v296 = vld [vmem:[#allocation2 + $0x1d8] sm:$0xff]
        %v297 = vld [vmem:[#allocation2 + $0x1e0] sm:$0xff]
        %v298 = vld [vmem:[#allocation2 + $0x1e8] sm:$0xff]
        %v299 = vld [vmem:[#allocation2 + $0x1f0] sm:$0xff]
        %v300 = vld [vmem:[#allocation2 + $0x1f8] sm:$0xff]
        %v301 = vld [vmem:[#allocation2 + $0x200] sm:$0xff]
        %v302 = vld [vmem:[#allocation2 + $0x208] sm:$0xff]
        %v303 = vld [vmem:[#allocation2 + $0x210] sm:$0xff]
        %v304 = vld [vmem:[#allocation2 + $0x218] sm:$0xff]
        %v305 = vld [vmem:[#allocation2 + $0x220] sm:$0xff]
        %v306 = vld [vmem:[#allocation2 + $0x228] sm:$0xff]
        %v307 = vld [vmem:[#allocation2 + $0x230] sm:$0xff]
        %v308 = vld [vmem:[#allocation2 + $0x238] sm:$0xff]
        %v309 = vld [vmem:[#allocation2 + $0x240] sm:$0xff]
        %v310 = vld [vmem:[#allocation2 + $0x248] sm:$0xff]
        %v311 = vld [vmem:[#allocation2 + $0x250] sm:$0xff]
        %v312 = vld [vmem:[#allocation2 + $0x258] sm:$0xff]
        %v313 = vld [vmem:[#allocation2 + $0x260] sm:$0xff]
        %v314 = vld [vmem:[#allocation2 + $0x268] sm:$0xff]
        %v315 = vld [vmem:[#allocation2 + $0x270] sm:$0xff]
        %v316 = vld [vmem:[#allocation2 + $0x278] sm:$0xff]
        %v317 = vld [vmem:[#allocation2 + $0x280] sm:$0xff]
        %v318 = vld [vmem:[#allocation2 + $0x288] sm:$0xff]
        %v319 = vld [vmem:[#allocation2 + $0x290] sm:$0xff]
        %v320 = vld [vmem:[#allocation2 + $0x298] sm:$0xff]
        %v321 = vld [vmem:[#allocation2 + $0x2a0] sm:$0xff]
        %v322 = vld [vmem:[#allocation2 + $0x2a8] sm:$0xff]
        %v323 = vld [vmem:[#allocation2 + $0x2b0] sm:$0xff]
        %v324 = vld [vmem:[#allocation2 + $0x2b8] sm:$0xff]
        %v325 = vld [vmem:[#allocation2 + $0x2c0] sm:$0xff]
        %v326 = vld [vmem:[#allocation2 + $0x2c8] sm:$0xff]
        %v327 = vld [vmem:[#allocation2 + $0x2d0] sm:$0xff]
        %v328 = vld [vmem:[#allocation2 + $0x2d8] sm:$0xff]
        %v329 = vld [vmem:[#allocation2 + $0x2e0] sm:$0xff]
        %v330 = vld [vmem:[#allocation2 + $0x2e8] sm:$0xff]
        %v331 = vld [vmem:[#allocation2 + $0x2f0] sm:$0xff]
        %v332 = vld [vmem:[#allocation2 + $0x2f8] sm:$0xff]
        %v333 = vld [vmem:[#allocation2 + $0x300] sm:$0xff]
        %v334 = vld [vmem:[#allocation2 + $0x308] sm:$0xff]
        %v335 = vld [vmem:[#allocation2 + $0x310] sm:$0xff]
        %v336 = vld [vmem:[#allocation2 + $0x318] sm:$0xff]
        %v337 = vld [vmem:[#allocation2 + $0x320] sm:$0xff]
        %v338 = vld [vmem:[#allocation2 + $0x328] sm:$0xff]
        %v339 = vld [vmem:[#allocation2 + $0x330] sm:$0xff]
        %v340 = vld [vmem:[#allocation2 + $0x338] sm:$0xff]
        %v341 = vld [vmem:[#allocation2 + $0x340] sm:$0xff]
        %v342 = vld [vmem:[#allocation2 + $0x348] sm:$0xff]
        %v343 = vld [vmem:[#allocation2 + $0x350] sm:$0xff]
        %v344 = vld [vmem:[#allocation2 + $0x358] sm:$0xff]
        %v345 = vld [vmem:[#allocation2 + $0x360] sm:$0xff]
        %v346 = vld [vmem:[#allocation2 + $0x368] sm:$0xff]
        %v347 = vld [vmem:[#allocation2 + $0x370] sm:$0xff]
        %v348 = vld [vmem:[#allocation2 + $0x378] sm:$0xff]
        %v349 = vld [vmem:[#allocation2 + $0x380] sm:$0xff]
        %v350 = vld [vmem:[#allocation2 + $0x388] sm:$0xff]
        %v351 = vld [vmem:[#allocation2 + $0x390] sm:$0xff]
        %v352 = vld [vmem:[#allocation2 + $0x398] sm:$0xff]
        %v353 = vld [vmem:[#allocation2 + $0x3a0] sm:$0xff]
        %v354 = vld [vmem:[#allocation2 + $0x3a8] sm:$0xff]
        %v355 = vld [vmem:[#allocation2 + $0x3b0] sm:$0xff]
        %v356 = vld [vmem:[#allocation2 + $0x3b8] sm:$0xff]
        %v357 = vld [vmem:[#allocation2 + $0x3c0] sm:$0xff]
        %v358 = vld [vmem:[#allocation2 + $0x3c8] sm:$0xff]
        %v359 = vld [vmem:[#allocation2 + $0x3d0] sm:$0xff]
        %v360 = vld [vmem:[#allocation2 + $0x3d8] sm:$0xff]
        %v361 = vld [vmem:[#allocation2 + $0x3e0] sm:$0xff]
        %v362 = vld [vmem:[#allocation2 + $0x3e8] sm:$0xff]
        %v363 = vld [vmem:[#allocation2 + $0x3f0] sm:$0xff]
        %v364 = vld [vmem:[#allocation2 + $0x3f8] sm:$0xff]
        %v365 = vld [vmem:[#allocation2 + $0x400] sm:$0xff]
        %v366 = vld [vmem:[#allocation2 + $0x408] sm:$0xff]
        %v367 = vld [vmem:[#allocation2 + $0x410] sm:$0xff]
        %v368 = vld [vmem:[#allocation2 + $0x418] sm:$0xff]
        %v369 = vld [vmem:[#allocation2 + $0x420] sm:$0xff]
        %v370 = vld [vmem:[#allocation2 + $0x428] sm:$0xff]
        %v371 = vld [vmem:[#allocation2 + $0x430] sm:$0xff]
        %v372 = vld [vmem:[#allocation2 + $0x438] sm:$0xff]
        %v373 = vld [vmem:[#allocation2 + $0x440] sm:$0xff]
        %v374 = vld [vmem:[#allocation2 + $0x448] sm:$0xff]
        %v375 = vld [vmem:[#allocation2 + $0x450] sm:$0xff]
        %v376 = vld [vmem:[#allocation2 + $0x458] sm:$0xff]
        %v377 = vld [vmem:[#allocation2 + $0x460] sm:$0xff]
        %v378 = vld [vmem:[#allocation2 + $0x468] sm:$0xff]
        %v379 = vld [vmem:[#allocation2 + $0x470] sm:$0xff]
        %v380 = vld [vmem:[#allocation2 + $0x478] sm:$0xff]
        %v381 = vld [vmem:[#allocation2 + $0x480] sm:$0xff]
        %v382 = vld [vmem:[#allocation2 + $0x488] sm:$0xff]
        %v383 = vld [vmem:[#allocation2 + $0x490] sm:$0xff]
        %v384 = vld [vmem:[#allocation2 + $0x498] sm:$0xff]
        %v385 = vld [vmem:[#allocation2 + $0x4a0] sm:$0xff]
        %v386 = vld [vmem:[#allocation2 + $0x4a8] sm:$0xff]
        %v387 = vld [vmem:[#allocation2 + $0x4b0] sm:$0xff]
        %v388 = vld [vmem:[#allocation2 + $0x4b8] sm:$0xff]
        %v389 = vld [vmem:[#allocation2 + $0x4c0] sm:$0xff]
        %v390 = vld [vmem:[#allocation2 + $0x4c8] sm:$0xff]
        %v391 = vld [vmem:[#allocation2 + $0x4d0] sm:$0xff]
        %v392 = vld [vmem:[#allocation2 + $0x4d8] sm:$0xff]
        %v393 = vld [vmem:[#allocation2 + $0x4e0] sm:$0xff]
        %v394 = vld [vmem:[#allocation2 + $0x4e8] sm:$0xff]
        %v395 = vld [vmem:[#allocation2 + $0x4f0] sm:$0xff]
        %v396 = vld [vmem:[#allocation2 + $0x4f8] sm:$0xff]
        %v397 = vld [vmem:[#allocation2 + $0x500] sm:$0xff]
        %v398 = vld [vmem:[#allocation2 + $0x508] sm:$0xff]
        %v399 = vld [vmem:[#allocation2 + $0x510] sm:$0xff]
        %v400 = vld [vmem:[#allocation2 + $0x518] sm:$0xff]
        %v401 = vld [vmem:[#allocation2 + $0x520] sm:$0xff]
        %v402 = vld [vmem:[#allocation2 + $0x528] sm:$0xff]
        %v403 = vld [vmem:[#allocation2 + $0x530] sm:$0xff]
        %v404 = vld [vmem:[#allocation2 + $0x538] sm:$0xff]
        %v405 = vld [vmem:[#allocation2 + $0x540] sm:$0xff]
        %v406 = vld [vmem:[#allocation2 + $0x548] sm:$0xff]
        %v407 = vld [vmem:[#allocation2 + $0x550] sm:$0xff]
        %v408 = vld [vmem:[#allocation2 + $0x558] sm:$0xff]
        %v409 = vld [vmem:[#allocation2 + $0x560] sm:$0xff]
        %v410 = vld [vmem:[#allocation2 + $0x568] sm:$0xff]
        %v411 = vld [vmem:[#allocation2 + $0x570] sm:$0xff]
        %v412 = vld [vmem:[#allocation2 + $0x578] sm:$0xff]
        %v413 = vld [vmem:[#allocation2 + $0x580] sm:$0xff]
        %v414 = vld [vmem:[#allocation2 + $0x588] sm:$0xff]
        %v415 = vld [vmem:[#allocation2 + $0x590] sm:$0xff]
        %v416 = vld [vmem:[#allocation2 + $0x598] sm:$0xff]
        %v417 = vld [vmem:[#allocation2 + $0x5a0] sm:$0xff]
        %v418 = vld [vmem:[#allocation2 + $0x5a8] sm:$0xff]
        %v419 = vld [vmem:[#allocation2 + $0x5b0] sm:$0xff]
        %v420 = vld [vmem:[#allocation2 + $0x5b8] sm:$0xff]
        %v421 = vld [vmem:[#allocation2 + $0x5c0] sm:$0xff]
        %v422 = vld [vmem:[#allocation2 + $0x5c8] sm:$0xff]
        %v423 = vld [vmem:[#allocation2 + $0x5d0] sm:$0xff]
        %v424 = vld [vmem:[#allocation2 + $0x5d8] sm:$0xff]
        %v425 = vld [vmem:[#allocation2 + $0x5e0] sm:$0xff]
        %v426 = vld [vmem:[#allocation2 + $0x5e8] sm:$0xff]
        %v427 = vld [vmem:[#allocation2 + $0x5f0] sm:$0xff]
        %v428 = vld [vmem:[#allocation2 + $0x5f8] sm:$0xff]
        %v429 = vld [vmem:[#allocation2 + $0x600] sm:$0xff]
        %v430 = vld [vmem:[#allocation2 + $0x608] sm:$0xff]
        %v431 = vld [vmem:[#allocation2 + $0x610] sm:$0xff]
        %v432 = vld [vmem:[#allocation2 + $0x618] sm:$0xff]
        %v433 = vld [vmem:[#allocation2 + $0x620] sm:$0xff]
        %v434 = vld [vmem:[#allocation2 + $0x628] sm:$0xff]
        %v435 = vld [vmem:[#allocation2 + $0x630] sm:$0xff]
        %v436 = vld [vmem:[#allocation2 + $0x638] sm:$0xff]
        %v437 = vld [vmem:[#allocation2 + $0x640] sm:$0xff]
        %v438 = vld [vmem:[#allocation2 + $0x648] sm:$0xff]
        %v439 = vld [vmem:[#allocation2 + $0x650] sm:$0xff]
        %v440 = vld [vmem:[#allocation2 + $0x658] sm:$0xff]
        %v441 = vld [vmem:[#allocation2 + $0x660] sm:$0xff]
        %v442 = vld [vmem:[#allocation2 + $0x668] sm:$0xff]
        %v443 = vld [vmem:[#allocation2 + $0x670] sm:$0xff]
        %v444 = vld [vmem:[#allocation2 + $0x678] sm:$0xff]
        %v445 = vld [vmem:[#allocation2 + $0x680] sm:$0xff]
        %v446 = vld [vmem:[#allocation2 + $0x688] sm:$0xff]
        %v447 = vld [vmem:[#allocation2 + $0x690] sm:$0xff]
        %v448 = vld [vmem:[#allocation2 + $0x698] sm:$0xff]
        %v449 = vld [vmem:[#allocation2 + $0x6a0] sm:$0xff]
        %v450 = vld [vmem:[#allocation2 + $0x6a8] sm:$0xff]
        %v451 = vld [vmem:[#allocation2 + $0x6b0] sm:$0xff]
        %v452 = vld [vmem:[#allocation2 + $0x6b8] sm:$0xff]
        %v453 = vld [vmem:[#allocation2 + $0x6c0] sm:$0xff]
        %v454 = vld [vmem:[#allocation2 + $0x6c8] sm:$0xff]
        %v455 = vld [vmem:[#allocation2 + $0x6d0] sm:$0xff]
        %v456 = vld [vmem:[#allocation2 + $0x6d8] sm:$0xff]
        %v457 = vld [vmem:[#allocation2 + $0x6e0] sm:$0xff]
        %v458 = vld [vmem:[#allocation2 + $0x6e8] sm:$0xff]
        %v459 = vld [vmem:[#allocation2 + $0x6f0] sm:$0xff]
        %v460 = vld [vmem:[#allocation2 + $0x6f8] sm:$0xff]
        %v461 = vld [vmem:[#allocation2 + $0x700] sm:$0xff]
        %v462 = vld [vmem:[#allocation2 + $0x708] sm:$0xff]
        %v463 = vld [vmem:[#allocation2 + $0x710] sm:$0xff]
        %v464 = vld [vmem:[#allocation2 + $0x718] sm:$0xff]
        %v465 = vld [vmem:[#allocation2 + $0x720] sm:$0xff]
        %v466 = vld [vmem:[#allocation2 + $0x728] sm:$0xff]
        %v467 = vld [vmem:[#allocation2 + $0x730] sm:$0xff]
        %v468 = vld [vmem:[#allocation2 + $0x738] sm:$0xff]
        %v469 = vld [vmem:[#allocation2 + $0x740] sm:$0xff]
        %v470 = vld [vmem:[#allocation2 + $0x748] sm:$0xff]
        %v471 = vld [vmem:[#allocation2 + $0x750] sm:$0xff]
        %v472 = vld [vmem:[#allocation2 + $0x758] sm:$0xff]
        %v473 = vld [vmem:[#allocation2 + $0x760] sm:$0xff]
        %v474 = vld [vmem:[#allocation2 + $0x768] sm:$0xff]
        %v475 = vld [vmem:[#allocation2 + $0x770] sm:$0xff]
        %v476 = vld [vmem:[#allocation2 + $0x778] sm:$0xff]
        %v477 = vld [vmem:[#allocation2 + $0x780] sm:$0xff]
        %v478 = vld [vmem:[#allocation2 + $0x788] sm:$0xff]
        %v479 = vld [vmem:[#allocation2 + $0x790] sm:$0xff]
        %v480 = vld [vmem:[#allocation2 + $0x798] sm:$0xff]
        %v481 = vld [vmem:[#allocation2 + $0x7a0] sm:$0xff]
        %v482 = vld [vmem:[#allocation2 + $0x7a8] sm:$0xff]
        %v483 = vld [vmem:[#allocation2 + $0x7b0] sm:$0xff]
        %v484 = vld [vmem:[#allocation2 + $0x7b8] sm:$0xff]
        %v485 = vld [vmem:[#allocation2 + $0x7c0] sm:$0xff]
        %v486 = vld [vmem:[#allocation2 + $0x7c8] sm:$0xff]
        %v487 = vld [vmem:[#allocation2 + $0x7d0] sm:$0xff]
        %v488 = vld [vmem:[#allocation2 + $0x7d8] sm:$0xff]
        %v489 = vld [vmem:[#allocation2 + $0x7e0] sm:$0xff]
        %v490 = vld [vmem:[#allocation2 + $0x7e8] sm:$0xff]
        %v491 = vld [vmem:[#allocation2 + $0x7f0] sm:$0xff]
        %v492 = vld [vmem:[#allocation2 + $0x7f8] sm:$0xff]
        %v493 = vld [vmem:[#allocation2 + $0x800] sm:$0xff]
        %v494 = vld [vmem:[#allocation2 + $0x808] sm:$0xff]
        %v495 = vld [vmem:[#allocation2 + $0x810] sm:$0xff]
        %v496 = vld [vmem:[#allocation2 + $0x818] sm:$0xff]
        %v497 = vld [vmem:[#allocation2 + $0x820] sm:$0xff]
        %v498 = vld [vmem:[#allocation2 + $0x828] sm:$0xff]
        %v499 = vld [vmem:[#allocation2 + $0x830] sm:$0xff]
        %v500 = vld [vmem:[#allocation2 + $0x838] sm:$0xff]
        %v501 = vld [vmem:[#allocation2 + $0x840] sm:$0xff]
        %v502 = vld [vmem:[#allocation2 + $0x848] sm:$0xff]
        %v503 = vld [vmem:[#allocation2 + $0x850] sm:$0xff]
        %v504 = vld [vmem:[#allocation2 + $0x858] sm:$0xff]
        %v505 = vld [vmem:[#allocation2 + $0x860] sm:$0xff]
        %v506 = vld [vmem:[#allocation2 + $0x868] sm:$0xff]
        %v507 = vld [vmem:[#allocation2 + $0x870] sm:$0xff]
        %v508 = vld [vmem:[#allocation2 + $0x878] sm:$0xff]
        %v509 = vld [vmem:[#allocation2 + $0x880] sm:$0xff]
        %v510 = vld [vmem:[#allocation2 + $0x888] sm:$0xff]
        %v511 = vld [vmem:[#allocation2 + $0x890] sm:$0xff]
        %v512 = vld [vmem:[#allocation2 + $0x898] sm:$0xff]
        %v513 = vld [vmem:[#allocation2 + $0x8a0] sm:$0xff]
        %v514 = vld [vmem:[#allocation2 + $0x8a8] sm:$0xff]
        %v515 = vld [vmem:[#allocation2 + $0x8b0] sm:$0xff]
        %v516 = vld [vmem:[#allocation2 + $0x8b8] sm:$0xff]
        %v517 = vld [vmem:[#allocation2 + $0x8c0] sm:$0xff]
        %v518 = vld [vmem:[#allocation2 + $0x8c8] sm:$0xff]
        %v519 = vld [vmem:[#allocation2 + $0x8d0] sm:$0xff]
        %v520 = vld [vmem:[#allocation2 + $0x8d8] sm:$0xff]
        %v521 = vld [vmem:[#allocation2 + $0x8e0] sm:$0xff]
        %v522 = vld [vmem:[#allocation2 + $0x8e8] sm:$0xff]
        %v523 = vld [vmem:[#allocation2 + $0x8f0] sm:$0xff]
        %v524 = vld [vmem:[#allocation2 + $0x8f8] sm:$0xff]
        %v525 = vld [vmem:[%s201] sm:$0xff]
        %v526 = vld [vmem:[%s201 + $0x8] sm:$0xff]
        %v527 = vld [vmem:[%s201 + $0x10] sm:$0xff]
        %v528 = vld [vmem:[%s201 + $0x18] sm:$0xff]
        %v529 = vld [vmem:[%s201 + $0x20] sm:$0xff]
        %v530 = vld [vmem:[%s201 + $0x28] sm:$0xff]
        %v531 = vld [vmem:[%s201 + $0x30] sm:$0xff]
        %v532 = vld [vmem:[%s201 + $0x38] sm:$0xff]
        %v533 = vld [vmem:[%s201 + $0x40] sm:$0xff]
        %v534 = vld [vmem:[%s201 + $0x48] sm:$0xff]
        %v535 = vld [vmem:[%s201 + $0x50] sm:$0xff]
        %v536 = vld [vmem:[%s201 + $0x58] sm:$0xff]
        %v537 = vld [vmem:[%s201 + $0x60] sm:$0xff]
        %v538 = vld [vmem:[%s201 + $0x68] sm:$0xff]
        %v539 = vld [vmem:[%s201 + $0x70] sm:$0xff]
        %v540 = vld [vmem:[%s201 + $0x78] sm:$0xff]
        %v541 = vld [vmem:[%s201 + $0x80] sm:$0xff]
        %v542 = vld [vmem:[%s201 + $0x88] sm:$0xff]
        %v543 = vld [vmem:[%s201 + $0x90] sm:$0xff]
        %v544 = vld [vmem:[%s201 + $0x98] sm:$0xff]
        %v545 = vld [vmem:[%s201 + $0xa0] sm:$0xff]
        %v546 = vld [vmem:[%s201 + $0xa8] sm:$0xff]
        %v547 = vld [vmem:[%s201 + $0xb0] sm:$0xff]
        %v548 = vld [vmem:[%s201 + $0xb8] sm:$0xff]
        %v549 = vld [vmem:[%s201 + $0xc0] sm:$0xff]
        %v550 = vld [vmem:[%s201 + $0xc8] sm:$0xff]
        %v551 = vld [vmem:[%s201 + $0xd0] sm:$0xff]
        %v552 = vld [vmem:[%s201 + $0xd8] sm:$0xff]
        %v553 = vld [vmem:[%s201 + $0xe0] sm:$0xff]
        %v554 = vld [vmem:[%s201 + $0xe8] sm:$0xff]
        %v555 = vld [vmem:[%s201 + $0xf0] sm:$0xff]
        %v556 = vld [vmem:[%s201 + $0xf8] sm:$0xff]
        %v557 = vld [vmem:[%s201 + $0x100] sm:$0xff]
        %v558 = vld [vmem:[%s201 + $0x108] sm:$0xff]
        %v559 = vld [vmem:[%s201 + $0x110] sm:$0xff]
        %v560 = vld [vmem:[%s201 + $0x118] sm:$0xff]
        %v561 = vld [vmem:[%s201 + $0x120] sm:$0xff]
        %v562 = vld [vmem:[%s201 + $0x128] sm:$0xff]
        %v563 = vld [vmem:[%s201 + $0x130] sm:$0xff]
        %v564 = vld [vmem:[%s201 + $0x138] sm:$0xff]
        %v565 = vld [vmem:[%s201 + $0x140] sm:$0xff]
        %v566 = vld [vmem:[%s201 + $0x148] sm:$0xff]
        %v567 = vld [vmem:[%s201 + $0x150] sm:$0xff]
        %v568 = vld [vmem:[%s201 + $0x158] sm:$0xff]
        %v569 = vld [vmem:[%s201 + $0x160] sm:$0xff]
        %v570 = vld [vmem:[%s201 + $0x168] sm:$0xff]
        %v571 = vld [vmem:[%s201 + $0x170] sm:$0xff]
        %v572 = vld [vmem:[%s201 + $0x178] sm:$0xff]
        %v573 = vld [vmem:[%s201 + $0x180] sm:$0xff]
        %v574 = vld [vmem:[%s201 + $0x188] sm:$0xff]
        %v575 = vld [vmem:[%s201 + $0x190] sm:$0xff]
        %v576 = vld [vmem:[%s201 + $0x198] sm:$0xff]
        %v577 = vld [vmem:[%s201 + $0x1a0] sm:$0xff]
        %v578 = vld [vmem:[%s201 + $0x1a8] sm:$0xff]
        %v579 = vld [vmem:[%s201 + $0x1b0] sm:$0xff]
        %v580 = vld [vmem:[%s201 + $0x1b8] sm:$0xff]
        %v581 = vld [vmem:[%s201 + $0x1c0] sm:$0xff]
        %v582 = vld [vmem:[%s201 + $0x1c8] sm:$0xff]
        %v583 = vld [vmem:[%s201 + $0x1d0] sm:$0xff]
        %v584 = vld [vmem:[%s201 + $0x1d8] sm:$0xff]
        %v585 = vld [vmem:[%s201 + $0x1e0] sm:$0xff]
        %v586 = vld [vmem:[%s201 + $0x1e8] sm:$0xff]
        %v587 = vld [vmem:[%s201 + $0x1f0] sm:$0xff]
        %v588 = vld [vmem:[%s201 + $0x1f8] sm:$0xff]
        %v589 = vld [vmem:[%s201 + $0x200] sm:$0xff]
        %v590 = vld [vmem:[%s201 + $0x208] sm:$0xff]
        %v591 = vld [vmem:[%s201 + $0x210] sm:$0xff]
        %v592 = vld [vmem:[%s201 + $0x218] sm:$0xff]
        %v593 = vld [vmem:[%s201 + $0x220] sm:$0xff]
        %v594 = vld [vmem:[%s201 + $0x228] sm:$0xff]
        %v595 = vld [vmem:[%s201 + $0x230] sm:$0xff]
        %v596 = vld [vmem:[%s201 + $0x238] sm:$0xff]
        %v597 = vld [vmem:[%s201 + $0x240] sm:$0xff]
        %v598 = vld [vmem:[%s201 + $0x248] sm:$0xff]
        %v599 = vld [vmem:[%s201 + $0x250] sm:$0xff]
        %v600 = vld [vmem:[%s201 + $0x258] sm:$0xff]
        %v601 = vld [vmem:[%s201 + $0x260] sm:$0xff]
        %v602 = vld [vmem:[%s201 + $0x268] sm:$0xff]
        %v603 = vld [vmem:[%s201 + $0x270] sm:$0xff]
        %v604 = vld [vmem:[%s201 + $0x278] sm:$0xff]
        %v605 = vld [vmem:[%s201 + $0x280] sm:$0xff]
        %v606 = vld [vmem:[%s201 + $0x288] sm:$0xff]
        %v607 = vld [vmem:[%s201 + $0x290] sm:$0xff]
        %v608 = vld [vmem:[%s201 + $0x298] sm:$0xff]
        %v609 = vld [vmem:[%s201 + $0x2a0] sm:$0xff]
        %v610 = vld [vmem:[%s201 + $0x2a8] sm:$0xff]
        %v611 = vld [vmem:[%s201 + $0x2b0] sm:$0xff]
        %v612 = vld [vmem:[%s201 + $0x2b8] sm:$0xff]
        %v613 = vld [vmem:[%s201 + $0x2c0] sm:$0xff]
        %v614 = vld [vmem:[%s201 + $0x2c8] sm:$0xff]
        %v615 = vld [vmem:[%s201 + $0x2d0] sm:$0xff]
        %v616 = vld [vmem:[%s201 + $0x2d8] sm:$0xff]
        %v617 = vld [vmem:[%s201 + $0x2e0] sm:$0xff]
        %v618 = vld [vmem:[%s201 + $0x2e8] sm:$0xff]
        %v619 = vld [vmem:[%s201 + $0x2f0] sm:$0xff]
        %v620 = vld [vmem:[%s201 + $0x2f8] sm:$0xff]
        %v621 = vld [vmem:[%s209] sm:$0x1]
        %v623 = vlaneseq
        %v624 = vshrl.u32 %v623, 7
        %v625 = vsub.s32 0, %v624
        %v626 = vrot.slane %v621, %v625
        %628 = vmatprep.subr.mxu0 %v616
        %629 = vmatpush1.xpose.msra.mxu0 %v615
        %630 = vmatprep.subr.mxu0 %v610
        %631 = vmatpush1.xpose.msra.mxu0 %v609
        %632 = vmatprep.subr.mxu0 %v604
        %633 = vmatpush1.xpose.msra.mxu0 %v603
        %634 = vmatprep.subr.mxu0 %v598
        %635 = vmatpush1.xpose.msra.mxu0 %v597
        %636 = vmatprep.subr.mxu0 %v592
        %637 = vmatpush1.xpose.msra.mxu0 %v591
        %638 = vmatprep.subr.mxu0 %v586
        %639 = vmatpush1.xpose.msra.mxu0 %v585
        %640 = vmatprep.subr.mxu0 %v580
        %641 = vmatpush1.xpose.msra.mxu0 %v579
        %642 = vmatprep.subr.mxu0 %v574
        %643 = vmatpush1.xpose.msra.mxu0 %v573
        %644 = vmatprep.subr.mxu0 %v568
        %645 = vmatpush1.xpose.msra.mxu0 %v567
        %646 = vmatprep.subr.mxu0 %v562
        %647 = vmatpush1.xpose.msra.mxu0 %v561
        %648 = vmatprep.subr.mxu0 %v556
        %649 = vmatpush1.xpose.msra.mxu0 %v555
        %650 = vmatprep.subr.mxu0 %v550
        %651 = vmatpush1.xpose.msra.mxu0 %v549
        %652 = vmatprep.subr.mxu0 %v544
        %653 = vmatpush1.xpose.msra.mxu0 %v543
        %654 = vmatprep.subr.mxu0 %v538
        %655 = vmatpush1.xpose.msra.mxu0 %v537
        %656 = vmatprep.subr.mxu0 %v532
        %657 = vmatpush1.xpose.msra.mxu0 %v531
        %658 = vmatprep.subr.mxu0 %v526
        %659 = vmatpush1.xpose.msra.mxu0 %v525
        %660 = vmatprep.subr.mxu0 0.0
        %661 = vmatpush2.xpose.msra.mxu0 0.0
        %662 = vmatprep.subr.mxu0 0.0
        %663 = vmatpush2.xpose.msra.mxu0 0.0
        %664 = vmatprep.subr.mxu0 0.0
        %665 = vmatpush2.xpose.msra.mxu0 0.0
        %666 = vmatprep.subr.mxu0 0.0
        %667 = vmatpush2.xpose.msra.mxu0 0.0
        %668 = vmatprep.subr.mxu0 0.0
        %669 = vmatpush2.xpose.msra.mxu0 0.0
        %670 = vmatprep.subr.mxu0 0.0
        %671 = vmatpush2.xpose.msra.mxu0 0.0
        %672 = vmatprep.subr.mxu0 0.0
        %673 = vmatpush2.xpose.msra.mxu0 0.0
        %674 = vmatprep.subr.mxu0 0.0
        %675 = vmatpush2.xpose.msra.mxu0 0.0
        %676 = vmatprep.subr.mxu0 0.0
        %677 = vmatpush2.xpose.msra.mxu0 0.0
        %678 = vmatprep.subr.mxu0 0.0
        %679 = vmatpush2.xpose.msra.mxu0 0.0
        %680 = vmatprep.subr.mxu0 0.0
        %681 = vmatpush2.xpose.msra.mxu0 0.0
        %682 = vmatprep.subr.mxu0 0.0
        %683 = vmatpush2.xpose.msra.mxu0 0.0
        %684 = vmatprep.subr.mxu0 0.0
        %685 = vmatpush2.xpose.msra.mxu0 0.0
        %686 = vmatprep.subr.mxu0 0.0
        %687 = vmatpush2.xpose.msra.mxu0 0.0
        %688 = vmatprep.subr.mxu0 0.0
        %689 = vmatpush2.xpose.msra.mxu0 0.0
        %690 = vmatprep.subr.mxu0 0.0
        %691 = vmatpush2.xpose.msra.mxu0 0.0
        %692 = vmatprep.mubr.f32.mxu0 %v238
        %693 = vmatmul.mubr.f32.gmra.mxu0 %v237
        %v694 = vpop.f32.mrf.mxu0
        %v695 = vadd.f32 %v626, %v694
        %v696 = vpop.f32.mrf.mxu0
        %697 = vmatprep.mubr.f32.mxu0 %v244
        %698 = vmatmul.mubr.f32.gmra.mxu0 %v243
        %v699 = vpop.f32.mrf.mxu0
        %v700 = vadd.f32 %v626, %v699
        %v701 = vpop.f32.mrf.mxu0
        %702 = vmatprep.mubr.f32.mxu0 %v250
        %703 = vmatmul.mubr.f32.gmra.mxu0 %v249
        %v704 = vpop.f32.mrf.mxu0
        %v705 = vadd.f32 %v626, %v704
        %v706 = vpop.f32.mrf.mxu0
        %707 = vmatprep.mubr.f32.mxu0 %v256
        %708 = vmatmul.mubr.f32.gmra.mxu0 %v255
        %v709 = vpop.f32.mrf.mxu0
        %v710 = vadd.f32 %v626, %v709
        %v711 = vpop.f32.mrf.mxu0
        %712 = vmatprep.mubr.f32.mxu0 %v262
        %713 = vmatmul.mubr.f32.gmra.mxu0 %v261
        %v714 = vpop.f32.mrf.mxu0
        %v715 = vadd.f32 %v626, %v714
        %v716 = vpop.f32.mrf.mxu0
        %717 = vmatprep.mubr.f32.mxu0 %v268
        %718 = vmatmul.mubr.f32.gmra.mxu0 %v267
        %v719 = vpop.f32.mrf.mxu0
        %v720 = vadd.f32 %v626, %v719
        %v721 = vpop.f32.mrf.mxu0
        %722 = vmatprep.mubr.f32.mxu0 %v274
        %723 = vmatmul.mubr.f32.gmra.mxu0 %v273
        %v724 = vpop.f32.mrf.mxu0
        %v725 = vadd.f32 %v626, %v724
        %v726 = vpop.f32.mrf.mxu0
        %727 = vmatprep.mubr.f32.mxu0 %v280
        %728 = vmatmul.mubr.f32.gmra.mxu0 %v279
        %v729 = vpop.f32.mrf.mxu0
        %v730 = vadd.f32 %v626, %v729
        %v731 = vpop.f32.mrf.mxu0
        %732 = vmatprep.mubr.f32.mxu0 %v286
        %733 = vmatmul.mubr.f32.gmra.mxu0 %v285
        %v734 = vpop.f32.mrf.mxu0
        %v735 = vadd.f32 %v626, %v734
        %v736 = vpop.f32.mrf.mxu0
        %737 = vmatprep.mubr.f32.mxu0 %v292
        %738 = vmatmul.mubr.f32.gmra.mxu0 %v291
        %v739 = vpop.f32.mrf.mxu0
        %v740 = vadd.f32 %v626, %v739
        %v741 = vpop.f32.mrf.mxu0
        %742 = vmatprep.mubr.f32.mxu0 %v298
        %743 = vmatmul.mubr.f32.gmra.mxu0 %v297
        %v744 = vpop.f32.mrf.mxu0
        %v745 = vadd.f32 %v626, %v744
        %v746 = vpop.f32.mrf.mxu0
        %747 = vmatprep.mubr.f32.mxu0 %v304
        %748 = vmatmul.mubr.f32.gmra.mxu0 %v303
        %v749 = vpop.f32.mrf.mxu0
        %v750 = vadd.f32 %v626, %v749
        %v751 = vpop.f32.mrf.mxu0
        %752 = vmatprep.mubr.f32.mxu0 %v310
        %753 = vmatmul.mubr.f32.gmra.mxu0 %v309
        %v754 = vpop.f32.mrf.mxu0
        %v755 = vadd.f32 %v626, %v754
        %v756 = vpop.f32.mrf.mxu0
        %757 = vmatprep.mubr.f32.mxu0 %v316
        %758 = vmatmul.mubr.f32.gmra.mxu0 %v315
        %v759 = vpop.f32.mrf.mxu0
        %v760 = vadd.f32 %v626, %v759
        %v761 = vpop.f32.mrf.mxu0
        %762 = vmatprep.mubr.f32.mxu0 %v322
        %763 = vmatmul.mubr.f32.gmra.mxu0 %v321
        %v764 = vpop.f32.mrf.mxu0
        %v765 = vadd.f32 %v626, %v764
        %v766 = vpop.f32.mrf.mxu0
        %767 = vmatprep.mubr.f32.mxu0 %v328
        %768 = vmatmul.mubr.f32.gmra.mxu0 %v327
        %v769 = vpop.f32.mrf.mxu0
        %v770 = vadd.f32 %v626, %v769
        %v771 = vpop.f32.mrf.mxu0
        %772 = vmatprep.mubr.f32.mxu0 %v334
        %773 = vmatmul.mubr.f32.gmra.mxu0 %v333
        %v774 = vpop.f32.mrf.mxu0
        %v775 = vadd.f32 %v626, %v774
        %v776 = vpop.f32.mrf.mxu0
        %777 = vmatprep.mubr.f32.mxu0 %v340
        %778 = vmatmul.mubr.f32.gmra.mxu0 %v339
        %v779 = vpop.f32.mrf.mxu0
        %v780 = vadd.f32 %v626, %v779
        %v781 = vpop.f32.mrf.mxu0
        %782 = vmatprep.mubr.f32.mxu0 %v346
        %783 = vmatmul.mubr.f32.gmra.mxu0 %v345
        %v784 = vpop.f32.mrf.mxu0
        %v785 = vadd.f32 %v626, %v784
        %v786 = vpop.f32.mrf.mxu0
        %787 = vmatprep.mubr.f32.mxu0 %v352
        %788 = vmatmul.mubr.f32.gmra.mxu0 %v351
        %v789 = vpop.f32.mrf.mxu0
        %v790 = vadd.f32 %v626, %v789
        %v791 = vpop.f32.mrf.mxu0
        %792 = vmatprep.mubr.f32.mxu0 %v358
        %793 = vmatmul.mubr.f32.gmra.mxu0 %v357
        %v794 = vpop.f32.mrf.mxu0
        %v795 = vadd.f32 %v626, %v794
        %v796 = vpop.f32.mrf.mxu0
        %797 = vmatprep.mubr.f32.mxu0 %v364
        %798 = vmatmul.mubr.f32.gmra.mxu0 %v363
        %v799 = vpop.f32.mrf.mxu0
        %v800 = vadd.f32 %v626, %v799
        %v801 = vpop.f32.mrf.mxu0
        %802 = vmatprep.mubr.f32.mxu0 %v370
        %803 = vmatmul.mubr.f32.gmra.mxu0 %v369
        %v804 = vpop.f32.mrf.mxu0
        %v805 = vadd.f32 %v626, %v804
        %v806 = vpop.f32.mrf.mxu0
        %807 = vmatprep.mubr.f32.mxu0 %v376
        %808 = vmatmul.mubr.f32.gmra.mxu0 %v375
        %v809 = vpop.f32.mrf.mxu0
        %v810 = vadd.f32 %v626, %v809
        %v811 = vpop.f32.mrf.mxu0
        %812 = vmatprep.mubr.f32.mxu0 %v382
        %813 = vmatmul.mubr.f32.gmra.mxu0 %v381
        %v814 = vpop.f32.mrf.mxu0
        %v815 = vadd.f32 %v626, %v814
        %v816 = vpop.f32.mrf.mxu0
        %817 = vmatprep.mubr.f32.mxu0 %v388
        %818 = vmatmul.mubr.f32.gmra.mxu0 %v387
        %v819 = vpop.f32.mrf.mxu0
        %v820 = vadd.f32 %v626, %v819
        %v821 = vpop.f32.mrf.mxu0
        %822 = vmatprep.mubr.f32.mxu0 %v394
        %823 = vmatmul.mubr.f32.gmra.mxu0 %v393
        %v824 = vpop.f32.mrf.mxu0
        %v825 = vadd.f32 %v626, %v824
        %v826 = vpop.f32.mrf.mxu0
        %827 = vmatprep.mubr.f32.mxu0 %v400
        %828 = vmatmul.mubr.f32.gmra.mxu0 %v399
        %v829 = vpop.f32.mrf.mxu0
        %v830 = vadd.f32 %v626, %v829
        %v831 = vpop.f32.mrf.mxu0
        %832 = vmatprep.mubr.f32.mxu0 %v406
        %833 = vmatmul.mubr.f32.gmra.mxu0 %v405
        %v834 = vpop.f32.mrf.mxu0
        %v835 = vadd.f32 %v626, %v834
        %v836 = vpop.f32.mrf.mxu0
        %837 = vmatprep.mubr.f32.mxu0 %v412
        %838 = vmatmul.mubr.f32.gmra.mxu0 %v411
        %v839 = vpop.f32.mrf.mxu0
        %v840 = vadd.f32 %v626, %v839
        %v841 = vpop.f32.mrf.mxu0
        %842 = vmatprep.mubr.f32.mxu0 %v418
        %843 = vmatmul.mubr.f32.gmra.mxu0 %v417
        %v844 = vpop.f32.mrf.mxu0
        %v845 = vadd.f32 %v626, %v844
        %v846 = vpop.f32.mrf.mxu0
        %847 = vmatprep.mubr.f32.mxu0 %v424
        %848 = vmatmul.mubr.f32.gmra.mxu0 %v423
        %v849 = vpop.f32.mrf.mxu0
        %v850 = vadd.f32 %v626, %v849
        %v851 = vpop.f32.mrf.mxu0
        %852 = vmatprep.mubr.f32.mxu0 %v430
        %853 = vmatmul.mubr.f32.gmra.mxu0 %v429
        %v854 = vpop.f32.mrf.mxu0
        %v855 = vadd.f32 %v626, %v854
        %v856 = vpop.f32.mrf.mxu0
        %857 = vmatprep.mubr.f32.mxu0 %v436
        %858 = vmatmul.mubr.f32.gmra.mxu0 %v435
        %v859 = vpop.f32.mrf.mxu0
        %v860 = vadd.f32 %v626, %v859
        %v861 = vpop.f32.mrf.mxu0
        %862 = vmatprep.mubr.f32.mxu0 %v442
        %863 = vmatmul.mubr.f32.gmra.mxu0 %v441
        %v864 = vpop.f32.mrf.mxu0
        %v865 = vadd.f32 %v626, %v864
        %v866 = vpop.f32.mrf.mxu0
        %867 = vmatprep.mubr.f32.mxu0 %v448
        %868 = vmatmul.mubr.f32.gmra.mxu0 %v447
        %v869 = vpop.f32.mrf.mxu0
        %v870 = vadd.f32 %v626, %v869
        %v871 = vpop.f32.mrf.mxu0
        %872 = vmatprep.mubr.f32.mxu0 %v454
        %873 = vmatmul.mubr.f32.gmra.mxu0 %v453
        %v874 = vpop.f32.mrf.mxu0
        %v875 = vadd.f32 %v626, %v874
        %v876 = vpop.f32.mrf.mxu0
        %877 = vmatprep.mubr.f32.mxu0 %v460
        %878 = vmatmul.mubr.f32.gmra.mxu0 %v459
        %v879 = vpop.f32.mrf.mxu0
        %v880 = vadd.f32 %v626, %v879
        %v881 = vpop.f32.mrf.mxu0
        %882 = vmatprep.mubr.f32.mxu0 %v466
        %883 = vmatmul.mubr.f32.gmra.mxu0 %v465
        %v884 = vpop.f32.mrf.mxu0
        %v885 = vadd.f32 %v626, %v884
        %v886 = vpop.f32.mrf.mxu0
        %887 = vmatprep.mubr.f32.mxu0 %v472
        %888 = vmatmul.mubr.f32.gmra.mxu0 %v471
        %v889 = vpop.f32.mrf.mxu0
        %v890 = vadd.f32 %v626, %v889
        %v891 = vpop.f32.mrf.mxu0
        %892 = vmatprep.mubr.f32.mxu0 %v478
        %893 = vmatmul.mubr.f32.gmra.mxu0 %v477
        %v894 = vpop.f32.mrf.mxu0
        %v895 = vadd.f32 %v626, %v894
        %v896 = vpop.f32.mrf.mxu0
        %897 = vmatprep.mubr.f32.mxu0 %v484
        %898 = vmatmul.mubr.f32.gmra.mxu0 %v483
        %v899 = vpop.f32.mrf.mxu0
        %v900 = vadd.f32 %v626, %v899
        %v901 = vpop.f32.mrf.mxu0
        %902 = vmatprep.mubr.f32.mxu0 %v490
        %903 = vmatmul.mubr.f32.gmra.mxu0 %v489
        %v904 = vpop.f32.mrf.mxu0
        %v905 = vadd.f32 %v626, %v904
        %v906 = vpop.f32.mrf.mxu0
        %907 = vmatprep.mubr.f32.mxu0 %v496
        %908 = vmatmul.mubr.f32.gmra.mxu0 %v495
        %v909 = vpop.f32.mrf.mxu0
        %v910 = vadd.f32 %v626, %v909
        %v911 = vpop.f32.mrf.mxu0
        %912 = vmatprep.mubr.f32.mxu0 %v502
        %913 = vmatmul.mubr.f32.gmra.mxu0 %v501
        %v914 = vpop.f32.mrf.mxu0
        %v915 = vadd.f32 %v626, %v914
        %v916 = vpop.f32.mrf.mxu0
        %917 = vmatprep.mubr.f32.mxu0 %v508
        %918 = vmatmul.mubr.f32.gmra.mxu0 %v507
        %v919 = vpop.f32.mrf.mxu0
        %v920 = vadd.f32 %v626, %v919
        %v921 = vpop.f32.mrf.mxu0
        %922 = vmatprep.mubr.f32.mxu0 %v514
        %923 = vmatmul.mubr.f32.gmra.mxu0 %v513
        %v924 = vpop.f32.mrf.mxu0
        %v925 = vadd.f32 %v626, %v924
        %v926 = vpop.f32.mrf.mxu0
        %927 = vmatprep.mubr.f32.mxu0 %v520
        %928 = vmatmul.mubr.f32.gmra.mxu0 %v519
        %v929 = vpop.f32.mrf.mxu0
        %v930 = vadd.f32 %v626, %v929
        %v931 = vpop.f32.mrf.mxu0
        %932 = vdwg.mxu0
        %933 = vmatprep.subr.mxu0 %v618
        %934 = vmatpush1.xpose.msra.mxu0 %v617
        %935 = vmatprep.subr.mxu0 %v612
        %936 = vmatpush1.xpose.msra.mxu0 %v611
        %937 = vmatprep.subr.mxu0 %v606
        %938 = vmatpush1.xpose.msra.mxu0 %v605
        %939 = vmatprep.subr.mxu0 %v600
        %940 = vmatpush1.xpose.msra.mxu0 %v599
        %941 = vmatprep.subr.mxu0 %v594
        %942 = vmatpush1.xpose.msra.mxu0 %v593
        %943 = vmatprep.subr.mxu0 %v588
        %944 = vmatpush1.xpose.msra.mxu0 %v587
        %945 = vmatprep.subr.mxu0 %v582
        %946 = vmatpush1.xpose.msra.mxu0 %v581
        %947 = vmatprep.subr.mxu0 %v576
        %948 = vmatpush1.xpose.msra.mxu0 %v575
        %949 = vmatprep.subr.mxu0 %v570
        %950 = vmatpush1.xpose.msra.mxu0 %v569
        %951 = vmatprep.subr.mxu0 %v564
        %952 = vmatpush1.xpose.msra.mxu0 %v563
        %953 = vmatprep.subr.mxu0 %v558
        %954 = vmatpush1.xpose.msra.mxu0 %v557
        %955 = vmatprep.subr.mxu0 %v552
        %956 = vmatpush1.xpose.msra.mxu0 %v551
        %957 = vmatprep.subr.mxu0 %v546
        %958 = vmatpush1.xpose.msra.mxu0 %v545
        %959 = vmatprep.subr.mxu0 %v540
        %960 = vmatpush1.xpose.msra.mxu0 %v539
        %961 = vmatprep.subr.mxu0 %v534
        %962 = vmatpush1.xpose.msra.mxu0 %v533
        %963 = vmatprep.subr.mxu0 %v528
        %964 = vmatpush1.xpose.msra.mxu0 %v527
        %965 = vmatprep.subr.mxu0 0.0
        %966 = vmatpush2.xpose.msra.mxu0 0.0
        %967 = vmatprep.subr.mxu0 0.0
        %968 = vmatpush2.xpose.msra.mxu0 0.0
        %969 = vmatprep.subr.mxu0 0.0
        %970 = vmatpush2.xpose.msra.mxu0 0.0
        %971 = vmatprep.subr.mxu0 0.0
        %972 = vmatpush2.xpose.msra.mxu0 0.0
        %973 = vmatprep.subr.mxu0 0.0
        %974 = vmatpush2.xpose.msra.mxu0 0.0
        %975 = vmatprep.subr.mxu0 0.0
        %976 = vmatpush2.xpose.msra.mxu0 0.0
        %977 = vmatprep.subr.mxu0 0.0
        %978 = vmatpush2.xpose.msra.mxu0 0.0
        %979 = vmatprep.subr.mxu0 0.0
        %980 = vmatpush2.xpose.msra.mxu0 0.0
        %981 = vmatprep.subr.mxu0 0.0
        %982 = vmatpush2.xpose.msra.mxu0 0.0
        %983 = vmatprep.subr.mxu0 0.0
        %984 = vmatpush2.xpose.msra.mxu0 0.0
        %985 = vmatprep.subr.mxu0 0.0
        %986 = vmatpush2.xpose.msra.mxu0 0.0
        %987 = vmatprep.subr.mxu0 0.0
        %988 = vmatpush2.xpose.msra.mxu0 0.0
        %989 = vmatprep.subr.mxu0 0.0
        %990 = vmatpush2.xpose.msra.mxu0 0.0
        %991 = vmatprep.subr.mxu0 0.0
        %992 = vmatpush2.xpose.msra.mxu0 0.0
        %993 = vmatprep.subr.mxu0 0.0
        %994 = vmatpush2.xpose.msra.mxu0 0.0
        %995 = vmatprep.subr.mxu0 0.0
        %996 = vmatpush2.xpose.msra.mxu0 0.0
        %997 = vmatprep.mubr.f32.mxu0 %v240
        %998 = vmatmul.mubr.f32.gmra.mxu0 %v239
        %v999 = vpop.f32.mrf.mxu0
        %v1000 = vadd.f32 %v695, %v999
        %v1001 = vpop.f32.mrf.mxu0
        %1002 = vmatprep.mubr.f32.mxu0 %v246
        %1003 = vmatmul.mubr.f32.gmra.mxu0 %v245
        %v1004 = vpop.f32.mrf.mxu0
        %v1005 = vadd.f32 %v700, %v1004
        %v1006 = vpop.f32.mrf.mxu0
        %1007 = vmatprep.mubr.f32.mxu0 %v252
        %1008 = vmatmul.mubr.f32.gmra.mxu0 %v251
        %v1009 = vpop.f32.mrf.mxu0
        %v1010 = vadd.f32 %v705, %v1009
        %v1011 = vpop.f32.mrf.mxu0
        %1012 = vmatprep.mubr.f32.mxu0 %v258
        %1013 = vmatmul.mubr.f32.gmra.mxu0 %v257
        %v1014 = vpop.f32.mrf.mxu0
        %v1015 = vadd.f32 %v710, %v1014
        %v1016 = vpop.f32.mrf.mxu0
        %1017 = vmatprep.mubr.f32.mxu0 %v264
        %1018 = vmatmul.mubr.f32.gmra.mxu0 %v263
        %v1019 = vpop.f32.mrf.mxu0
        %v1020 = vadd.f32 %v715, %v1019
        %v1021 = vpop.f32.mrf.mxu0
        %1022 = vmatprep.mubr.f32.mxu0 %v270
        %1023 = vmatmul.mubr.f32.gmra.mxu0 %v269
        %v1024 = vpop.f32.mrf.mxu0
        %v1025 = vadd.f32 %v720, %v1024
        %v1026 = vpop.f32.mrf.mxu0
        %1027 = vmatprep.mubr.f32.mxu0 %v276
        %1028 = vmatmul.mubr.f32.gmra.mxu0 %v275
        %v1029 = vpop.f32.mrf.mxu0
        %v1030 = vadd.f32 %v725, %v1029
        %v1031 = vpop.f32.mrf.mxu0
        %1032 = vmatprep.mubr.f32.mxu0 %v282
        %1033 = vmatmul.mubr.f32.gmra.mxu0 %v281
        %v1034 = vpop.f32.mrf.mxu0
        %v1035 = vadd.f32 %v730, %v1034
        %v1036 = vpop.f32.mrf.mxu0
        %1037 = vmatprep.mubr.f32.mxu0 %v288
        %1038 = vmatmul.mubr.f32.gmra.mxu0 %v287
        %v1039 = vpop.f32.mrf.mxu0
        %v1040 = vadd.f32 %v735, %v1039
        %v1041 = vpop.f32.mrf.mxu0
        %1042 = vmatprep.mubr.f32.mxu0 %v294
        %1043 = vmatmul.mubr.f32.gmra.mxu0 %v293
        %v1044 = vpop.f32.mrf.mxu0
        %v1045 = vadd.f32 %v740, %v1044
        %v1046 = vpop.f32.mrf.mxu0
        %1047 = vmatprep.mubr.f32.mxu0 %v300
        %1048 = vmatmul.mubr.f32.gmra.mxu0 %v299
        %v1049 = vpop.f32.mrf.mxu0
        %v1050 = vadd.f32 %v745, %v1049
        %v1051 = vpop.f32.mrf.mxu0
        %1052 = vmatprep.mubr.f32.mxu0 %v306
        %1053 = vmatmul.mubr.f32.gmra.mxu0 %v305
        %v1054 = vpop.f32.mrf.mxu0
        %v1055 = vadd.f32 %v750, %v1054
        %v1056 = vpop.f32.mrf.mxu0
        %1057 = vmatprep.mubr.f32.mxu0 %v312
        %1058 = vmatmul.mubr.f32.gmra.mxu0 %v311
        %v1059 = vpop.f32.mrf.mxu0
        %v1060 = vadd.f32 %v755, %v1059
        %v1061 = vpop.f32.mrf.mxu0
        %1062 = vmatprep.mubr.f32.mxu0 %v318
        %1063 = vmatmul.mubr.f32.gmra.mxu0 %v317
        %v1064 = vpop.f32.mrf.mxu0
        %v1065 = vadd.f32 %v760, %v1064
        %v1066 = vpop.f32.mrf.mxu0
        %1067 = vmatprep.mubr.f32.mxu0 %v324
        %1068 = vmatmul.mubr.f32.gmra.mxu0 %v323
        %v1069 = vpop.f32.mrf.mxu0
        %v1070 = vadd.f32 %v765, %v1069
        %v1071 = vpop.f32.mrf.mxu0
        %1072 = vmatprep.mubr.f32.mxu0 %v330
        %1073 = vmatmul.mubr.f32.gmra.mxu0 %v329
        %v1074 = vpop.f32.mrf.mxu0
        %v1075 = vadd.f32 %v770, %v1074
        %v1076 = vpop.f32.mrf.mxu0
        %1077 = vmatprep.mubr.f32.mxu0 %v336
        %1078 = vmatmul.mubr.f32.gmra.mxu0 %v335
        %v1079 = vpop.f32.mrf.mxu0
        %v1080 = vadd.f32 %v775, %v1079
        %v1081 = vpop.f32.mrf.mxu0
        %1082 = vmatprep.mubr.f32.mxu0 %v342
        %1083 = vmatmul.mubr.f32.gmra.mxu0 %v341
        %v1084 = vpop.f32.mrf.mxu0
        %v1085 = vadd.f32 %v780, %v1084
        %v1086 = vpop.f32.mrf.mxu0
        %1087 = vmatprep.mubr.f32.mxu0 %v348
        %1088 = vmatmul.mubr.f32.gmra.mxu0 %v347
        %v1089 = vpop.f32.mrf.mxu0
        %v1090 = vadd.f32 %v785, %v1089
        %v1091 = vpop.f32.mrf.mxu0
        %1092 = vmatprep.mubr.f32.mxu0 %v354
        %1093 = vmatmul.mubr.f32.gmra.mxu0 %v353
        %v1094 = vpop.f32.mrf.mxu0
        %v1095 = vadd.f32 %v790, %v1094
        %v1096 = vpop.f32.mrf.mxu0
        %1097 = vmatprep.mubr.f32.mxu0 %v360
        %1098 = vmatmul.mubr.f32.gmra.mxu0 %v359
        %v1099 = vpop.f32.mrf.mxu0
        %v1100 = vadd.f32 %v795, %v1099
        %v1101 = vpop.f32.mrf.mxu0
        %1102 = vmatprep.mubr.f32.mxu0 %v366
        %1103 = vmatmul.mubr.f32.gmra.mxu0 %v365
        %v1104 = vpop.f32.mrf.mxu0
        %v1105 = vadd.f32 %v800, %v1104
        %v1106 = vpop.f32.mrf.mxu0
        %1107 = vmatprep.mubr.f32.mxu0 %v372
        %1108 = vmatmul.mubr.f32.gmra.mxu0 %v371
        %v1109 = vpop.f32.mrf.mxu0
        %v1110 = vadd.f32 %v805, %v1109
        %v1111 = vpop.f32.mrf.mxu0
        %1112 = vmatprep.mubr.f32.mxu0 %v378
        %1113 = vmatmul.mubr.f32.gmra.mxu0 %v377
        %v1114 = vpop.f32.mrf.mxu0
        %v1115 = vadd.f32 %v810, %v1114
        %v1116 = vpop.f32.mrf.mxu0
        %1117 = vmatprep.mubr.f32.mxu0 %v384
        %1118 = vmatmul.mubr.f32.gmra.mxu0 %v383
        %v1119 = vpop.f32.mrf.mxu0
        %v1120 = vadd.f32 %v815, %v1119
        %v1121 = vpop.f32.mrf.mxu0
        %1122 = vmatprep.mubr.f32.mxu0 %v390
        %1123 = vmatmul.mubr.f32.gmra.mxu0 %v389
        %v1124 = vpop.f32.mrf.mxu0
        %v1125 = vadd.f32 %v820, %v1124
        %v1126 = vpop.f32.mrf.mxu0
        %1127 = vmatprep.mubr.f32.mxu0 %v396
        %1128 = vmatmul.mubr.f32.gmra.mxu0 %v395
        %v1129 = vpop.f32.mrf.mxu0
        %v1130 = vadd.f32 %v825, %v1129
        %v1131 = vpop.f32.mrf.mxu0
        %1132 = vmatprep.mubr.f32.mxu0 %v402
        %1133 = vmatmul.mubr.f32.gmra.mxu0 %v401
        %v1134 = vpop.f32.mrf.mxu0
        %v1135 = vadd.f32 %v830, %v1134
        %v1136 = vpop.f32.mrf.mxu0
        %1137 = vmatprep.mubr.f32.mxu0 %v408
        %1138 = vmatmul.mubr.f32.gmra.mxu0 %v407
        %v1139 = vpop.f32.mrf.mxu0
        %v1140 = vadd.f32 %v835, %v1139
        %v1141 = vpop.f32.mrf.mxu0
        %1142 = vmatprep.mubr.f32.mxu0 %v414
        %1143 = vmatmul.mubr.f32.gmra.mxu0 %v413
        %v1144 = vpop.f32.mrf.mxu0
        %v1145 = vadd.f32 %v840, %v1144
        %v1146 = vpop.f32.mrf.mxu0
        %1147 = vmatprep.mubr.f32.mxu0 %v420
        %1148 = vmatmul.mubr.f32.gmra.mxu0 %v419
        %v1149 = vpop.f32.mrf.mxu0
        %v1150 = vadd.f32 %v845, %v1149
        %v1151 = vpop.f32.mrf.mxu0
        %1152 = vmatprep.mubr.f32.mxu0 %v426
        %1153 = vmatmul.mubr.f32.gmra.mxu0 %v425
        %v1154 = vpop.f32.mrf.mxu0
        %v1155 = vadd.f32 %v850, %v1154
        %v1156 = vpop.f32.mrf.mxu0
        %1157 = vmatprep.mubr.f32.mxu0 %v432
        %1158 = vmatmul.mubr.f32.gmra.mxu0 %v431
        %v1159 = vpop.f32.mrf.mxu0
        %v1160 = vadd.f32 %v855, %v1159
        %v1161 = vpop.f32.mrf.mxu0
        %1162 = vmatprep.mubr.f32.mxu0 %v438
        %1163 = vmatmul.mubr.f32.gmra.mxu0 %v437
        %v1164 = vpop.f32.mrf.mxu0
        %v1165 = vadd.f32 %v860, %v1164
        %v1166 = vpop.f32.mrf.mxu0
        %1167 = vmatprep.mubr.f32.mxu0 %v444
        %1168 = vmatmul.mubr.f32.gmra.mxu0 %v443
        %v1169 = vpop.f32.mrf.mxu0
        %v1170 = vadd.f32 %v865, %v1169
        %v1171 = vpop.f32.mrf.mxu0
        %1172 = vmatprep.mubr.f32.mxu0 %v450
        %1173 = vmatmul.mubr.f32.gmra.mxu0 %v449
        %v1174 = vpop.f32.mrf.mxu0
        %v1175 = vadd.f32 %v870, %v1174
        %v1176 = vpop.f32.mrf.mxu0
        %1177 = vmatprep.mubr.f32.mxu0 %v456
        %1178 = vmatmul.mubr.f32.gmra.mxu0 %v455
        %v1179 = vpop.f32.mrf.mxu0
        %v1180 = vadd.f32 %v875, %v1179
        %v1181 = vpop.f32.mrf.mxu0
        %1182 = vmatprep.mubr.f32.mxu0 %v462
        %1183 = vmatmul.mubr.f32.gmra.mxu0 %v461
        %v1184 = vpop.f32.mrf.mxu0
        %v1185 = vadd.f32 %v880, %v1184
        %v1186 = vpop.f32.mrf.mxu0
        %1187 = vmatprep.mubr.f32.mxu0 %v468
        %1188 = vmatmul.mubr.f32.gmra.mxu0 %v467
        %v1189 = vpop.f32.mrf.mxu0
        %v1190 = vadd.f32 %v885, %v1189
        %v1191 = vpop.f32.mrf.mxu0
        %1192 = vmatprep.mubr.f32.mxu0 %v474
        %1193 = vmatmul.mubr.f32.gmra.mxu0 %v473
        %v1194 = vpop.f32.mrf.mxu0
        %v1195 = vadd.f32 %v890, %v1194
        %v1196 = vpop.f32.mrf.mxu0
        %1197 = vmatprep.mubr.f32.mxu0 %v480
        %1198 = vmatmul.mubr.f32.gmra.mxu0 %v479
        %v1199 = vpop.f32.mrf.mxu0
        %v1200 = vadd.f32 %v895, %v1199
        %v1201 = vpop.f32.mrf.mxu0
        %1202 = vmatprep.mubr.f32.mxu0 %v486
        %1203 = vmatmul.mubr.f32.gmra.mxu0 %v485
        %v1204 = vpop.f32.mrf.mxu0
        %v1205 = vadd.f32 %v900, %v1204
        %v1206 = vpop.f32.mrf.mxu0
        %1207 = vmatprep.mubr.f32.mxu0 %v492
        %1208 = vmatmul.mubr.f32.gmra.mxu0 %v491
        %v1209 = vpop.f32.mrf.mxu0
        %v1210 = vadd.f32 %v905, %v1209
        %v1211 = vpop.f32.mrf.mxu0
        %1212 = vmatprep.mubr.f32.mxu0 %v498
        %1213 = vmatmul.mubr.f32.gmra.mxu0 %v497
        %v1214 = vpop.f32.mrf.mxu0
        %v1215 = vadd.f32 %v910, %v1214
        %v1216 = vpop.f32.mrf.mxu0
        %1217 = vmatprep.mubr.f32.mxu0 %v504
        %1218 = vmatmul.mubr.f32.gmra.mxu0 %v503
        %v1219 = vpop.f32.mrf.mxu0
        %v1220 = vadd.f32 %v915, %v1219
        %v1221 = vpop.f32.mrf.mxu0
        %1222 = vmatprep.mubr.f32.mxu0 %v510
        %1223 = vmatmul.mubr.f32.gmra.mxu0 %v509
        %v1224 = vpop.f32.mrf.mxu0
        %v1225 = vadd.f32 %v920, %v1224
        %v1226 = vpop.f32.mrf.mxu0
        %1227 = vmatprep.mubr.f32.mxu0 %v516
        %1228 = vmatmul.mubr.f32.gmra.mxu0 %v515
        %v1229 = vpop.f32.mrf.mxu0
        %v1230 = vadd.f32 %v925, %v1229
        %v1231 = vpop.f32.mrf.mxu0
        %1232 = vmatprep.mubr.f32.mxu0 %v522
        %1233 = vmatmul.mubr.f32.gmra.mxu0 %v521
        %v1234 = vpop.f32.mrf.mxu0
        %v1235 = vadd.f32 %v930, %v1234
        %v1236 = vpop.f32.mrf.mxu0
        %1237 = vdwg.mxu0
        %1238 = vmatprep.subr.mxu0 %v620
        %1239 = vmatpush1.xpose.msra.mxu0 %v619
        %1240 = vmatprep.subr.mxu0 %v614
        %1241 = vmatpush1.xpose.msra.mxu0 %v613
        %1242 = vmatprep.subr.mxu0 %v608
        %1243 = vmatpush1.xpose.msra.mxu0 %v607
        %1244 = vmatprep.subr.mxu0 %v602
        %1245 = vmatpush1.xpose.msra.mxu0 %v601
        %1246 = vmatprep.subr.mxu0 %v596
        %1247 = vmatpush1.xpose.msra.mxu0 %v595
        %1248 = vmatprep.subr.mxu0 %v590
        %1249 = vmatpush1.xpose.msra.mxu0 %v589
        %1250 = vmatprep.subr.mxu0 %v584
        %1251 = vmatpush1.xpose.msra.mxu0 %v583
        %1252 = vmatprep.subr.mxu0 %v578
        %1253 = vmatpush1.xpose.msra.mxu0 %v577
        %1254 = vmatprep.subr.mxu0 %v572
        %1255 = vmatpush1.xpose.msra.mxu0 %v571
        %1256 = vmatprep.subr.mxu0 %v566
        %1257 = vmatpush1.xpose.msra.mxu0 %v565
        %1258 = vmatprep.subr.mxu0 %v560
        %1259 = vmatpush1.xpose.msra.mxu0 %v559
        %1260 = vmatprep.subr.mxu0 %v554
        %1261 = vmatpush1.xpose.msra.mxu0 %v553
        %1262 = vmatprep.subr.mxu0 %v548
        %1263 = vmatpush1.xpose.msra.mxu0 %v547
        %1264 = vmatprep.subr.mxu0 %v542
        %1265 = vmatpush1.xpose.msra.mxu0 %v541
        %1266 = vmatprep.subr.mxu0 %v536
        %1267 = vmatpush1.xpose.msra.mxu0 %v535
        %1268 = vmatprep.subr.mxu0 %v530
        %1269 = vmatpush1.xpose.msra.mxu0 %v529
        %1270 = vmatprep.subr.mxu0 0.0
        %1271 = vmatpush2.xpose.msra.mxu0 0.0
        %1272 = vmatprep.subr.mxu0 0.0
        %1273 = vmatpush2.xpose.msra.mxu0 0.0
        %1274 = vmatprep.subr.mxu0 0.0
        %1275 = vmatpush2.xpose.msra.mxu0 0.0
        %1276 = vmatprep.subr.mxu0 0.0
        %1277 = vmatpush2.xpose.msra.mxu0 0.0
        %1278 = vmatprep.subr.mxu0 0.0
        %1279 = vmatpush2.xpose.msra.mxu0 0.0
        %1280 = vmatprep.subr.mxu0 0.0
        %1281 = vmatpush2.xpose.msra.mxu0 0.0
        %1282 = vmatprep.subr.mxu0 0.0
        %1283 = vmatpush2.xpose.msra.mxu0 0.0
        %1284 = vmatprep.subr.mxu0 0.0
        %1285 = vmatpush2.xpose.msra.mxu0 0.0
        %1286 = vmatprep.subr.mxu0 0.0
        %1287 = vmatpush2.xpose.msra.mxu0 0.0
        %1288 = vmatprep.subr.mxu0 0.0
        %1289 = vmatpush2.xpose.msra.mxu0 0.0
        %1290 = vmatprep.subr.mxu0 0.0
        %1291 = vmatpush2.xpose.msra.mxu0 0.0
        %1292 = vmatprep.subr.mxu0 0.0
        %1293 = vmatpush2.xpose.msra.mxu0 0.0
        %1294 = vmatprep.subr.mxu0 0.0
        %1295 = vmatpush2.xpose.msra.mxu0 0.0
        %1296 = vmatprep.subr.mxu0 0.0
        %1297 = vmatpush2.xpose.msra.mxu0 0.0
        %1298 = vmatprep.subr.mxu0 0.0
        %1299 = vmatpush2.xpose.msra.mxu0 0.0
        %1300 = vmatprep.subr.mxu0 0.0
        %1301 = vmatpush2.xpose.msra.mxu0 0.0
        %1302 = vmatprep.mubr.f32.mxu0 %v242
        %1303 = vmatmul.mubr.f32.gmra.mxu0 %v241
        %v1304 = vpop.f32.mrf.mxu0
        %v1305 = vadd.f32 %v1000, %v1304
        %v1306 = vpop.f32.mrf.mxu0
        %1307 = vmatprep.mubr.f32.mxu0 %v248
        %1308 = vmatmul.mubr.f32.gmra.mxu0 %v247
        %v1309 = vpop.f32.mrf.mxu0
        %v1310 = vadd.f32 %v1005, %v1309
        %v1311 = vpop.f32.mrf.mxu0
        %1312 = vmatprep.mubr.f32.mxu0 %v254
        %1313 = vmatmul.mubr.f32.gmra.mxu0 %v253
        %v1314 = vpop.f32.mrf.mxu0
        %v1315 = vadd.f32 %v1010, %v1314
        %v1316 = vpop.f32.mrf.mxu0
        %1317 = vmatprep.mubr.f32.mxu0 %v260
        %1318 = vmatmul.mubr.f32.gmra.mxu0 %v259
        %v1319 = vpop.f32.mrf.mxu0
        %v1320 = vadd.f32 %v1015, %v1319
        %v1321 = vpop.f32.mrf.mxu0
        %1322 = vmatprep.mubr.f32.mxu0 %v266
        %1323 = vmatmul.mubr.f32.gmra.mxu0 %v265
        %v1324 = vpop.f32.mrf.mxu0
        %v1325 = vadd.f32 %v1020, %v1324
        %v1326 = vpop.f32.mrf.mxu0
        %1327 = vmatprep.mubr.f32.mxu0 %v272
        %1328 = vmatmul.mubr.f32.gmra.mxu0 %v271
        %v1329 = vpop.f32.mrf.mxu0
        %v1330 = vadd.f32 %v1025, %v1329
        %v1331 = vpop.f32.mrf.mxu0
        %1332 = vmatprep.mubr.f32.mxu0 %v278
        %1333 = vmatmul.mubr.f32.gmra.mxu0 %v277
        %v1334 = vpop.f32.mrf.mxu0
        %v1335 = vadd.f32 %v1030, %v1334
        %v1336 = vpop.f32.mrf.mxu0
        %1337 = vmatprep.mubr.f32.mxu0 %v284
        %1338 = vmatmul.mubr.f32.gmra.mxu0 %v283
        %v1339 = vpop.f32.mrf.mxu0
        %v1340 = vadd.f32 %v1035, %v1339
        %v1341 = vpop.f32.mrf.mxu0
        %1342 = vmatprep.mubr.f32.mxu0 %v290
        %1343 = vmatmul.mubr.f32.gmra.mxu0 %v289
        %v1344 = vpop.f32.mrf.mxu0
        %v1345 = vadd.f32 %v1040, %v1344
        %v1346 = vpop.f32.mrf.mxu0
        %1347 = vmatprep.mubr.f32.mxu0 %v296
        %1348 = vmatmul.mubr.f32.gmra.mxu0 %v295
        %v1349 = vpop.f32.mrf.mxu0
        %v1350 = vadd.f32 %v1045, %v1349
        %v1351 = vpop.f32.mrf.mxu0
        %1352 = vmatprep.mubr.f32.mxu0 %v302
        %1353 = vmatmul.mubr.f32.gmra.mxu0 %v301
        %v1354 = vpop.f32.mrf.mxu0
        %v1355 = vadd.f32 %v1050, %v1354
        %v1356 = vpop.f32.mrf.mxu0
        %1357 = vmatprep.mubr.f32.mxu0 %v308
        %1358 = vmatmul.mubr.f32.gmra.mxu0 %v307
        %v1359 = vpop.f32.mrf.mxu0
        %v1360 = vadd.f32 %v1055, %v1359
        %v1361 = vpop.f32.mrf.mxu0
        %1362 = vmatprep.mubr.f32.mxu0 %v314
        %1363 = vmatmul.mubr.f32.gmra.mxu0 %v313
        %v1364 = vpop.f32.mrf.mxu0
        %v1365 = vadd.f32 %v1060, %v1364
        %v1366 = vpop.f32.mrf.mxu0
        %1367 = vmatprep.mubr.f32.mxu0 %v320
        %1368 = vmatmul.mubr.f32.gmra.mxu0 %v319
        %v1369 = vpop.f32.mrf.mxu0
        %v1370 = vadd.f32 %v1065, %v1369
        %v1371 = vpop.f32.mrf.mxu0
        %1372 = vmatprep.mubr.f32.mxu0 %v326
        %1373 = vmatmul.mubr.f32.gmra.mxu0 %v325
        %v1374 = vpop.f32.mrf.mxu0
        %v1375 = vadd.f32 %v1070, %v1374
        %v1376 = vpop.f32.mrf.mxu0
        %1377 = vmatprep.mubr.f32.mxu0 %v332
        %1378 = vmatmul.mubr.f32.gmra.mxu0 %v331
        %v1379 = vpop.f32.mrf.mxu0
        %v1380 = vadd.f32 %v1075, %v1379
        %v1381 = vpop.f32.mrf.mxu0
        %1382 = vmatprep.mubr.f32.mxu0 %v338
        %1383 = vmatmul.mubr.f32.gmra.mxu0 %v337
        %v1384 = vpop.f32.mrf.mxu0
        %v1385 = vadd.f32 %v1080, %v1384
        %v1386 = vpop.f32.mrf.mxu0
        %1387 = vmatprep.mubr.f32.mxu0 %v344
        %1388 = vmatmul.mubr.f32.gmra.mxu0 %v343
        %v1389 = vpop.f32.mrf.mxu0
        %v1390 = vadd.f32 %v1085, %v1389
        %v1391 = vpop.f32.mrf.mxu0
        %1392 = vmatprep.mubr.f32.mxu0 %v350
        %1393 = vmatmul.mubr.f32.gmra.mxu0 %v349
        %v1394 = vpop.f32.mrf.mxu0
        %v1395 = vadd.f32 %v1090, %v1394
        %v1396 = vpop.f32.mrf.mxu0
        %1397 = vmatprep.mubr.f32.mxu0 %v356
        %1398 = vmatmul.mubr.f32.gmra.mxu0 %v355
        %v1399 = vpop.f32.mrf.mxu0
        %v1400 = vadd.f32 %v1095, %v1399
        %v1401 = vpop.f32.mrf.mxu0
        %1402 = vmatprep.mubr.f32.mxu0 %v362
        %1403 = vmatmul.mubr.f32.gmra.mxu0 %v361
        %v1404 = vpop.f32.mrf.mxu0
        %v1405 = vadd.f32 %v1100, %v1404
        %v1406 = vpop.f32.mrf.mxu0
        %1407 = vmatprep.mubr.f32.mxu0 %v368
        %1408 = vmatmul.mubr.f32.gmra.mxu0 %v367
        %v1409 = vpop.f32.mrf.mxu0
        %v1410 = vadd.f32 %v1105, %v1409
        %v1411 = vpop.f32.mrf.mxu0
        %1412 = vmatprep.mubr.f32.mxu0 %v374
        %1413 = vmatmul.mubr.f32.gmra.mxu0 %v373
        %v1414 = vpop.f32.mrf.mxu0
        %v1415 = vadd.f32 %v1110, %v1414
        %v1416 = vpop.f32.mrf.mxu0
        %1417 = vmatprep.mubr.f32.mxu0 %v380
        %1418 = vmatmul.mubr.f32.gmra.mxu0 %v379
        %v1419 = vpop.f32.mrf.mxu0
        %v1420 = vadd.f32 %v1115, %v1419
        %v1421 = vpop.f32.mrf.mxu0
        %1422 = vmatprep.mubr.f32.mxu0 %v386
        %1423 = vmatmul.mubr.f32.gmra.mxu0 %v385
        %v1424 = vpop.f32.mrf.mxu0
        %v1425 = vadd.f32 %v1120, %v1424
        %v1426 = vpop.f32.mrf.mxu0
        %1427 = vmatprep.mubr.f32.mxu0 %v392
        %1428 = vmatmul.mubr.f32.gmra.mxu0 %v391
        %v1429 = vpop.f32.mrf.mxu0
        %v1430 = vadd.f32 %v1125, %v1429
        %v1431 = vpop.f32.mrf.mxu0
        %1432 = vmatprep.mubr.f32.mxu0 %v398
        %1433 = vmatmul.mubr.f32.gmra.mxu0 %v397
        %v1434 = vpop.f32.mrf.mxu0
        %v1435 = vadd.f32 %v1130, %v1434
        %v1436 = vpop.f32.mrf.mxu0
        %1437 = vmatprep.mubr.f32.mxu0 %v404
        %1438 = vmatmul.mubr.f32.gmra.mxu0 %v403
        %v1439 = vpop.f32.mrf.mxu0
        %v1440 = vadd.f32 %v1135, %v1439
        %v1441 = vpop.f32.mrf.mxu0
        %1442 = vmatprep.mubr.f32.mxu0 %v410
        %1443 = vmatmul.mubr.f32.gmra.mxu0 %v409
        %v1444 = vpop.f32.mrf.mxu0
        %v1445 = vadd.f32 %v1140, %v1444
        %v1446 = vpop.f32.mrf.mxu0
        %1447 = vmatprep.mubr.f32.mxu0 %v416
        %1448 = vmatmul.mubr.f32.gmra.mxu0 %v415
        %v1449 = vpop.f32.mrf.mxu0
        %v1450 = vadd.f32 %v1145, %v1449
        %v1451 = vpop.f32.mrf.mxu0
        %1452 = vmatprep.mubr.f32.mxu0 %v422
        %1453 = vmatmul.mubr.f32.gmra.mxu0 %v421
        %v1454 = vpop.f32.mrf.mxu0
        %v1455 = vadd.f32 %v1150, %v1454
        %v1456 = vpop.f32.mrf.mxu0
        %1457 = vmatprep.mubr.f32.mxu0 %v428
        %1458 = vmatmul.mubr.f32.gmra.mxu0 %v427
        %v1459 = vpop.f32.mrf.mxu0
        %v1460 = vadd.f32 %v1155, %v1459
        %v1461 = vpop.f32.mrf.mxu0
        %1462 = vmatprep.mubr.f32.mxu0 %v434
        %1463 = vmatmul.mubr.f32.gmra.mxu0 %v433
        %v1464 = vpop.f32.mrf.mxu0
        %v1465 = vadd.f32 %v1160, %v1464
        %v1466 = vpop.f32.mrf.mxu0
        %1467 = vmatprep.mubr.f32.mxu0 %v440
        %1468 = vmatmul.mubr.f32.gmra.mxu0 %v439
        %v1469 = vpop.f32.mrf.mxu0
        %v1470 = vadd.f32 %v1165, %v1469
        %v1471 = vpop.f32.mrf.mxu0
        %1472 = vmatprep.mubr.f32.mxu0 %v446
        %1473 = vmatmul.mubr.f32.gmra.mxu0 %v445
        %v1474 = vpop.f32.mrf.mxu0
        %v1475 = vadd.f32 %v1170, %v1474
        %v1476 = vpop.f32.mrf.mxu0
        %1477 = vmatprep.mubr.f32.mxu0 %v452
        %1478 = vmatmul.mubr.f32.gmra.mxu0 %v451
        %v1479 = vpop.f32.mrf.mxu0
        %v1480 = vadd.f32 %v1175, %v1479
        %v1481 = vpop.f32.mrf.mxu0
        %1482 = vmatprep.mubr.f32.mxu0 %v458
        %1483 = vmatmul.mubr.f32.gmra.mxu0 %v457
        %v1484 = vpop.f32.mrf.mxu0
        %v1485 = vadd.f32 %v1180, %v1484
        %v1486 = vpop.f32.mrf.mxu0
        %1487 = vmatprep.mubr.f32.mxu0 %v464
        %1488 = vmatmul.mubr.f32.gmra.mxu0 %v463
        %v1489 = vpop.f32.mrf.mxu0
        %v1490 = vadd.f32 %v1185, %v1489
        %v1491 = vpop.f32.mrf.mxu0
        %1492 = vmatprep.mubr.f32.mxu0 %v470
        %1493 = vmatmul.mubr.f32.gmra.mxu0 %v469
        %v1494 = vpop.f32.mrf.mxu0
        %v1495 = vadd.f32 %v1190, %v1494
        %v1496 = vpop.f32.mrf.mxu0
        %1497 = vmatprep.mubr.f32.mxu0 %v476
        %1498 = vmatmul.mubr.f32.gmra.mxu0 %v475
        %v1499 = vpop.f32.mrf.mxu0
        %v1500 = vadd.f32 %v1195, %v1499
        %v1501 = vpop.f32.mrf.mxu0
        %1502 = vmatprep.mubr.f32.mxu0 %v482
        %1503 = vmatmul.mubr.f32.gmra.mxu0 %v481
        %v1504 = vpop.f32.mrf.mxu0
        %v1505 = vadd.f32 %v1200, %v1504
        %v1506 = vpop.f32.mrf.mxu0
        %1507 = vmatprep.mubr.f32.mxu0 %v488
        %1508 = vmatmul.mubr.f32.gmra.mxu0 %v487
        %v1509 = vpop.f32.mrf.mxu0
        %v1510 = vadd.f32 %v1205, %v1509
        %v1511 = vpop.f32.mrf.mxu0
        %1512 = vmatprep.mubr.f32.mxu0 %v494
        %1513 = vmatmul.mubr.f32.gmra.mxu0 %v493
        %v1514 = vpop.f32.mrf.mxu0
        %v1515 = vadd.f32 %v1210, %v1514
        %v1516 = vpop.f32.mrf.mxu0
        %1517 = vmatprep.mubr.f32.mxu0 %v500
        %1518 = vmatmul.mubr.f32.gmra.mxu0 %v499
        %v1519 = vpop.f32.mrf.mxu0
        %v1520 = vadd.f32 %v1215, %v1519
        %v1521 = vpop.f32.mrf.mxu0
        %1522 = vmatprep.mubr.f32.mxu0 %v506
        %1523 = vmatmul.mubr.f32.gmra.mxu0 %v505
        %v1524 = vpop.f32.mrf.mxu0
        %v1525 = vadd.f32 %v1220, %v1524
        %v1526 = vpop.f32.mrf.mxu0
        %1527 = vmatprep.mubr.f32.mxu0 %v512
        %1528 = vmatmul.mubr.f32.gmra.mxu0 %v511
        %v1529 = vpop.f32.mrf.mxu0
        %v1530 = vadd.f32 %v1225, %v1529
        %v1531 = vpop.f32.mrf.mxu0
        %1532 = vmatprep.mubr.f32.mxu0 %v518
        %1533 = vmatmul.mubr.f32.gmra.mxu0 %v517
        %v1534 = vpop.f32.mrf.mxu0
        %v1535 = vadd.f32 %v1230, %v1534
        %v1536 = vpop.f32.mrf.mxu0
        %1537 = vmatprep.mubr.f32.mxu0 %v524
        %1538 = vmatmul.mubr.f32.gmra.mxu0 %v523
        %v1539 = vpop.f32.mrf.mxu0
        %v1540 = vadd.f32 %v1235, %v1539
        %v1541 = vpop.f32.mrf.mxu0
        %1542 = vdwg.mxu0
        %1543 = vst [vmem:[%s235] sm:$0xff] %v1305
        %1544 = vst [vmem:[%s235 + $0x8] sm:$0xff] %v1310
        %1545 = vst [vmem:[%s235 + $0x10] sm:$0xff] %v1315
        %1546 = vst [vmem:[%s235 + $0x18] sm:$0xff] %v1320
        %1547 = vst [vmem:[%s235 + $0x20] sm:$0xff] %v1325
        %1548 = vst [vmem:[%s235 + $0x28] sm:$0xff] %v1330
        %1549 = vst [vmem:[%s235 + $0x30] sm:$0xff] %v1335
        %1550 = vst [vmem:[%s235 + $0x38] sm:$0xff] %v1340
        %1551 = vst [vmem:[%s235 + $0x40] sm:$0xff] %v1345
        %1552 = vst [vmem:[%s235 + $0x48] sm:$0xff] %v1350
        %1553 = vst [vmem:[%s235 + $0x50] sm:$0xff] %v1355
        %1554 = vst [vmem:[%s235 + $0x58] sm:$0xff] %v1360
        %1555 = vst [vmem:[%s235 + $0x60] sm:$0xff] %v1365
        %1556 = vst [vmem:[%s235 + $0x68] sm:$0xff] %v1370
        %1557 = vst [vmem:[%s235 + $0x70] sm:$0xff] %v1375
        %1558 = vst [vmem:[%s235 + $0x78] sm:$0xff] %v1380
        %1559 = vst [vmem:[%s235 + $0x80] sm:$0xff] %v1385
        %1560 = vst [vmem:[%s235 + $0x88] sm:$0xff] %v1390
        %1561 = vst [vmem:[%s235 + $0x90] sm:$0xff] %v1395
        %1562 = vst [vmem:[%s235 + $0x98] sm:$0xff] %v1400
        %1563 = vst [vmem:[%s235 + $0xa0] sm:$0xff] %v1405
        %1564 = vst [vmem:[%s235 + $0xa8] sm:$0xff] %v1410
        %1565 = vst [vmem:[%s235 + $0xb0] sm:$0xff] %v1415
        %1566 = vst [vmem:[%s235 + $0xb8] sm:$0xff] %v1420
        %1567 = vst [vmem:[%s235 + $0xc0] sm:$0xff] %v1425
        %1568 = vst [vmem:[%s235 + $0xc8] sm:$0xff] %v1430
        %1569 = vst [vmem:[%s235 + $0xd0] sm:$0xff] %v1435
        %1570 = vst [vmem:[%s235 + $0xd8] sm:$0xff] %v1440
        %1571 = vst [vmem:[%s235 + $0xe0] sm:$0xff] %v1445
        %1572 = vst [vmem:[%s235 + $0xe8] sm:$0xff] %v1450
        %1573 = vst [vmem:[%s235 + $0xf0] sm:$0xff] %v1455
        %1574 = vst [vmem:[%s235 + $0xf8] sm:$0xff] %v1460
        %1575 = vst [vmem:[%s235 + $0x100] sm:$0xff] %v1465
        %1576 = vst [vmem:[%s235 + $0x108] sm:$0xff] %v1470
        %1577 = vst [vmem:[%s235 + $0x110] sm:$0xff] %v1475
        %1578 = vst [vmem:[%s235 + $0x118] sm:$0xff] %v1480
        %1579 = vst [vmem:[%s235 + $0x120] sm:$0xff] %v1485
        %1580 = vst [vmem:[%s235 + $0x128] sm:$0xff] %v1490
        %1581 = vst [vmem:[%s235 + $0x130] sm:$0xff] %v1495
        %1582 = vst [vmem:[%s235 + $0x138] sm:$0xff] %v1500
        %1583 = vst [vmem:[%s235 + $0x140] sm:$0xff] %v1505
        %1584 = vst [vmem:[%s235 + $0x148] sm:$0xff] %v1510
        %1585 = vst [vmem:[%s235 + $0x150] sm:$0xff] %v1515
        %1586 = vst [vmem:[%s235 + $0x158] sm:$0xff] %v1520
        %1587 = vst [vmem:[%s235 + $0x160] sm:$0xff] %v1525
        %1588 = vst [vmem:[%s235 + $0x168] sm:$0xff] %v1530
        %1589 = vst [vmem:[%s235 + $0x170] sm:$0xff] %v1535
        %1590 = vst [vmem:[%s235 + $0x178] sm:$0xff] %v1540
        %s1591 = sand.u32 %s102, 1
        %s1592 = scalar_lea.sflag [#allocation4], %s1591
        %s1593 = sand.u32 %s102, 1
        %s1594 = smul.addr %s1593, 384
        %s1595 = scalar_lea.vmem [#allocation8], %s1594
        // Predicated region
        $region45: #{tpu_custom_call.1} parent=31 // pred_check
          %p1596 = pneg %p112
        $region46: #{tpu_custom_call.1} parent=31 // pred_check_branch
          %1598 = sbr.rel (%p1596) target = $region48
        $region47: #{tpu_custom_call.1} parent=31 // pred_region
          %s1600 = ssub.s32 6144, 6144
          %1601 = vsyncadd %s1592, %s1600
          %s1602 = smul.addr %s21, 128
          %s1603 = scalar_lea.hbm %s3, %s1602
          %s1604 = sshll.u32 %s1595, 4
          %s1605 = int_to_ptr.vmem [resolvable:$true] %s1604
          %1610 = dma.vmem_to_hbm [thread:$0]  %s1605, 6144, %s1603, %s1592, 128, 768, 8
        $region48: #{tpu_custom_call.1} parent=31 // pred_fallthru
          _
      $region32: #{tpu_custom_call.1} parent=5 // pred_fallthru
        _
      %p1611 = scmp.le.s32.totalorder 2, %s16
      // Predicated region
      $region49: #{tpu_custom_call.1} parent=5 // pred_check
        %p1612 = pneg %p1611
      $region50: #{tpu_custom_call.1} parent=5 // pred_check_branch
        %1614 = sbr.rel (%p1612) target = $region52
      $region51: #{tpu_custom_call.1} parent=5 // pred_region
        %s1615 = ssub.s32 %s16, 2
        // Predicated region
        $region53: #{tpu_custom_call.1} parent=51 // pred_check
          %p1616 = pneg %p118
        $region54: #{tpu_custom_call.1} parent=51 // pred_check_branch
          %1618 = sbr.rel (%p1616) target = $region56
        $region55: #{tpu_custom_call.1} parent=51 // pred_region
          %s1619 = sand.u32 %s103, 1
          %s1620 = scalar_lea.sflag [#allocation4], %s1619
          %s1621 = sand.u32 %s103, 1
          %s1622 = smul.addr %s1621, 384
          %s1623 = scalar_lea.vmem [#allocation8], %s1622
          %1624 = dma.done %s1620, 6144
        $region56: #{tpu_custom_call.1} parent=51 // pred_fallthru
          _
      $region52: #{tpu_custom_call.1} parent=5 // pred_fallthru
        _
    $region6: #{tpu_custom_call.1} parent=1 // loop_footer
      %s20 = sadd.s32 1, %s16
    $region7: #{tpu_custom_call.1} parent=1 // loop_footer_branch
      %15 = sbr.rel target = $region3
    $region8: #{tpu_custom_call.1} parent=1 // loop_exit
      _
    %1625 = vsyncpa [#allocation3], 1
    %s1626 = scalar_lea.sflag [#allocation3], 1
    %1627 = vsyncpa %s1626, 1
    %1628 = vsyncpa [#allocation6], 1
    %s1629 = scalar_lea.sflag [#allocation6], 1
    %1630 = vsyncpa %s1629, 1
    %1631 = vsyncpa [#allocation4], 1
    %s1632 = scalar_lea.sflag [#allocation4], 1
    %1633 = vsyncpa %s1632, 1

</llo_original>
